<compile_context>
chip_gen: v6e
topology: v6e:2x2x1
jax: 0.10.0
libtpu: 0.0.40
codegen_flags: <defaults>
</compile_context>

<pallas_src>
import functools

import jax
import jax.numpy as jnp
from jax.experimental import pallas as pl
from jax.experimental.pallas import tpu as pltpu

_LANE = 128
_SUBLANE = 8


def _round_up(x, m):
    return ((x + m - 1) // m) * m


def embnet_kernel(tok_ref, w_ref, emb_ref,
                  w1_ref, b1_ref, w2_ref, b2_ref, w3_ref, b3_ref,
                  out_ref):
    """One batch tile of the full forward pass.

    tok_ref : [TB, S]   int32 token ids (padded rows hold 0)
    w_ref   : [TB, S]   f32 pooling weights (1/S or mask/sum(mask); 0 on pad rows)
    emb_ref : [Vp, Hp]  bf16 embedding table (zero-padded)
    w1..w3  : bf16 weights stored [in, out]; b1..b3 f32 biases [1, out] (128-padded)
    out_ref : [TB, Cp]  f32 lane-dense output tile
    """
    tok = tok_ref[...]                                   # [TB, S] int32
    wts = w_ref[...]                                     # [TB, S] f32
    TB, S = tok.shape
    Vp = emb_ref.shape[0]

    # Hoisted vocab-id row (built once; JAX does not CSE broadcast_in_dim).
    vocab_ids = jax.lax.broadcasted_iota(jnp.int32, (TB, Vp), 1)

    # Fused embedding lookup + pooling as a weighted token histogram.
    # Statically unrolled S-loop keeps live state at [TB, Vp] (~TB/8 vregs):
    # no [TB, S, Vp] rank-3 one-hot, no spills, no cross-sublane XLU reduce.
    hist = jnp.zeros((TB, Vp), jnp.float32)
    for s in range(S):                      # S is small & static -> unrolled
        hist = hist + jnp.where(tok[:, s:s + 1] == vocab_ids,
                                wts[:, s:s + 1], 0.0)
    # (out-of-range ids never match and hit zero-padded emb rows; torch errors)

    # Single MXU matmul replaces one-hot gather + pooling matmuls.
    pooled = jnp.dot(hist.astype(jnp.bfloat16), emb_ref[...],
                     preferred_element_type=jnp.float32)        # [TB, Hp] f32

    # MLP: Linear -> ReLU -> Linear -> ReLU -> Linear (bf16 MXU, f32 accum).
    h1 = jnp.dot(pooled.astype(jnp.bfloat16), w1_ref[...],
                 preferred_element_type=jnp.float32) + b1_ref[...]
    h1 = jnp.maximum(h1, 0.0)
    h2 = jnp.dot(h1.astype(jnp.bfloat16), w2_ref[...],
                 preferred_element_type=jnp.float32) + b2_ref[...]
    h2 = jnp.maximum(h2, 0.0)
    out_ref[...] = jnp.dot(h2.astype(jnp.bfloat16), w3_ref[...],
                           preferred_element_type=jnp.float32) + b3_ref[...]


def _choose_batch_tile(batch):
    """Generation-aware batch tile (host-side, static)."""
    try:
        kind = jax.devices()[0].device_kind.lower()
    except Exception:
        kind = ""
    two_tc = "v7" in kind                          # v7x: 2 TensorCores / chip
    tb_cap = 256 if ("v6" in kind or "v7" in kind) else 128   # v6e MXU is 256-tall
    b8 = _round_up(max(batch, 1), _SUBLANE)
    if two_tc and b8 >= 2 * _SUBLANE:
        # >= 2 grid steps so dimension_semantics=("parallel",) uses both cores.
        return min(tb_cap, _round_up(pl.cdiv(b8, 2), _SUBLANE))
    # Single TC: grid is a serial loop -> one step for small B, cap for big B.
    return min(tb_cap, b8)


def _pad2(x, rows, cols, dtype=None):
    r, c = x.shape
    x = jnp.pad(x, ((0, rows - r), (0, cols - c)))
    return x.astype(dtype) if dtype is not None else x


@functools.partial(jax.jit, static_argnames=("single_buffer",))
def _embnet_forward_impl(tokens, params, mask, *, single_buffer):
    B, S = tokens.shape
    emb, w1, b1, w2, b2, w3, b3 = params
    V, H = emb.shape
    H2 = w1.shape[1]
    C = w3.shape[1]

    # ----- pooling weights [B, S] (mean, or guarded masked mean) -----
    if mask is None:
        weights = jnp.full((B, S), 1.0 / S, dtype=jnp.float32)
    else:
        m = mask.astype(jnp.float32)
        denom = jnp.sum(m, axis=1, keepdims=True)
        denom = jnp.where(denom > 0, denom, 1.0)   # guard all-zero rows (torch: NaN)
        weights = m / denom

    # ----- padding: lane-dense (128) MXU dims, sublane-aligned batch tile -----
    Vp = _round_up(V, _LANE)     # K of hist @ emb (hist lanes are padded anyway)
    Hp = _round_up(H, _LANE)
    H2p = _round_up(H2, _LANE)
    Cp = _round_up(C, _LANE)

    TB = _choose_batch_tile(B)
    B_pad = _round_up(B, TB)

    tok_p = jnp.pad(tokens.astype(jnp.int32), ((0, B_pad - B), (0, 0)))  # pad id 0
    w_p = jnp.pad(weights, ((0, B_pad - B), (0, 0)))                     # pad wt 0

    emb_p = _pad2(emb, Vp, Hp, jnp.bfloat16)
    w1_p = _pad2(w1, Hp, H2p, jnp.bfloat16)
    w2_p = _pad2(w2, H2p, H2p, jnp.bfloat16)
    w3_p = _pad2(w3, H2p, Cp, jnp.bfloat16)
    b1_p = _pad2(b1, 1, H2p)
    b2_p = _pad2(b2, 1, H2p)
    b3_p = _pad2(b3, 1, Cp)

    def inv_spec(shape):
        # Grid-invariant input: never re-DMA'd, but double-buffered by default.
        # Request a single buffer to halve its VMEM footprint (matters on v7x).
        if single_buffer:
            return pl.BlockSpec(shape, lambda i: (0, 0),
                                pipeline_mode=pl.Buffered(1))
        return pl.BlockSpec(shape, lambda i: (0, 0))

    grid = (B_pad // TB,)

    out = pl.pallas_call(
        embnet_kernel,
        out_shape=jax.ShapeDtypeStruct((B_pad, Cp), jnp.float32),
        grid=grid,
        in_specs=[
            pl.BlockSpec((TB, S), lambda i: (i, 0)),   # tokens (batch-tiled)
            pl.BlockSpec((TB, S), lambda i: (i, 0)),   # pooling weights
            inv_spec((Vp, Hp)),                        # embedding table
            inv_spec((Hp, H2p)),                       # w1
            inv_spec((1, H2p)),                        # b1
            inv_spec((H2p, H2p)),                      # w2
            inv_spec((1, H2p)),                        # b2
            inv_spec((H2p, Cp)),                       # w3 (class-padded)
            inv_spec((1, Cp)),                         # b3 (class-padded)
        ],
        out_specs=pl.BlockSpec((TB, Cp), lambda i: (i, 0)),
        compiler_params=pltpu.CompilerParams(
            dimension_semantics=("parallel",),
            vmem_limit_bytes=32 * 1024 * 1024),
    )(tok_p, w_p, emb_p, w1_p, b1_p, w2_p, b2_p, w3_p, b3_p)

    return out[:B, :C]


_SINGLE_BUFFER_OK = None  # tri-state: None (unknown) / True / False


def embnet_forward(tokens, params, mask=None):
    """tokens: [B, S] int ids; mask: optional [B, S]; returns [B, num_classes] f32."""
    global _SINGLE_BUFFER_OK
    if _SINGLE_BUFFER_OK is None:
        if hasattr(pl, "Buffered"):
            try:
                out = _embnet_forward_impl(tokens, params, mask, single_buffer=True)
                jax.block_until_ready(out)
                _SINGLE_BUFFER_OK = True
                return out
            except Exception:
                _SINGLE_BUFFER_OK = False   # fall back to default double-buffering
        else:
            _SINGLE_BUFFER_OK = False
    return _embnet_forward_impl(tokens, params, mask,
                                single_buffer=_SINGLE_BUFFER_OK)


def init_params(key, vocab_size, hidden_size, num_classes):
    ks = jax.random.split(key, 7)
    H, H2 = hidden_size, hidden_size * 2
    emb = jax.random.normal(ks[0], (vocab_size, H), jnp.float32)

    # Linear weights stored as [in, out] (torch weight.T); uniform init like torch.
    def lin(kw, kb, fan_in, fan_out):
        bound = 1.0 / jnp.sqrt(fan_in)
        w = jax.random.uniform(kw, (fan_in, fan_out), jnp.float32, -bound, bound)
        b = jax.random.uniform(kb, (1, fan_out), jnp.float32, -bound, bound)
        return w, b

    w1, b1 = lin(ks[1], ks[2], H, H2)
    w2, b2 = lin(ks[3], ks[4], H2, H2)
    w3, b3 = lin(ks[5], ks[6], H2, num_classes)
    return (emb, w1, b1, w2, b2, w3, b3)


if __name__ == "__main__":
    vocab_size, hidden_size, num_classes = 32, 32, 10
    B, S = 2, 8

    key = jax.random.PRNGKey(0)
    k_tok, k_mask, k_param = jax.random.split(key, 3)
    tokens = jax.random.randint(k_tok, (B, S), 0, vocab_size, dtype=jnp.int32)
    params = init_params(k_param, vocab_size, hidden_size, num_classes)
    emb, w1, b1, w2, b2, w3, b3 = params

    def ref_forward(tok, msk):
        x = jnp.take(emb, tok, axis=0)                           # [B, S, H]
        if msk is None:
            pooled = x.mean(axis=1)
        else:
            mf = msk.astype(jnp.float32)
            pooled = (x * mf[..., None]).sum(axis=1) / mf.sum(axis=1, keepdims=True)
        h = jnp.maximum(pooled @ w1 + b1, 0.0)
        h = jnp.maximum(h @ w2 + b2, 0.0)
        return h @ w3 + b3

    # --- mean-pool path ---
    out = embnet_forward(tokens, params, mask=None)
    jax.block_until_ready(out)
    assert out.shape == (B, num_classes)
    # bf16 weights inside the kernel vs f32 reference -> bf16-level tolerance.
    assert jnp.allclose(out, ref_forward(tokens, None), atol=2e-2, rtol=2e-2), \
        "mean-pool mismatch"

    # --- masked-mean path ---
    mask = (jax.random.uniform(k_mask, (B, S)) > 0.3).astype(jnp.int32)
    mask = mask.at[:, 0].set(1)   # keep every row non-empty (matches torch semantics)
    out_m = embnet_forward(tokens, params, mask=mask)
    jax.block_until_ready(out_m)
    assert jnp.allclose(out_m, ref_forward(tokens, mask), atol=2e-2, rtol=2e-2), \
        "masked-mean mismatch"

    print("KERNEL_OK")
</pallas_src>

<mosaic_0001>
module attributes {stable_mosaic.version = 11 : i64} {
  func.func @embnet_kernel(%arg0: i32, %arg1: memref<8x8xi32, #tpu.memory_space<vmem>>, %arg2: memref<8x8xf32, #tpu.memory_space<vmem>>, %arg3: memref<128x128xbf16, #tpu.memory_space<vmem>>, %arg4: memref<128x128xbf16, #tpu.memory_space<vmem>>, %arg5: memref<1x128xf32, #tpu.memory_space<vmem>>, %arg6: memref<128x128xbf16, #tpu.memory_space<vmem>>, %arg7: memref<1x128xf32, #tpu.memory_space<vmem>>, %arg8: memref<128x128xbf16, #tpu.memory_space<vmem>>, %arg9: memref<1x128xf32, #tpu.memory_space<vmem>>, %arg10: memref<8x128xf32, #tpu.memory_space<vmem>>) attributes {dimension_semantics = [#tpu.dimension_semantics<parallel>], iteration_bounds = array<i64: 1>, scalar_prefetch = 0 : i64, scratch_operands = 0 : i64, tpu.core_type = #tpu.core_type<tc>, window_params = [{transform_indices = @transform_0, window_bounds = array<i64: 8, 8>}, {transform_indices = @transform_1, window_bounds = array<i64: 8, 8>}, {pipeline_mode = #tpu.pipeline_mode<synchronous>, transform_indices = @transform_2, window_bounds = array<i64: 128, 128>}, {pipeline_mode = #tpu.pipeline_mode<synchronous>, transform_indices = @transform_3, window_bounds = array<i64: 128, 128>}, {pipeline_mode = #tpu.pipeline_mode<synchronous>, transform_indices = @transform_4, window_bounds = array<i64: 1, 128>}, {pipeline_mode = #tpu.pipeline_mode<synchronous>, transform_indices = @transform_5, window_bounds = array<i64: 128, 128>}, {pipeline_mode = #tpu.pipeline_mode<synchronous>, transform_indices = @transform_6, window_bounds = array<i64: 1, 128>}, {pipeline_mode = #tpu.pipeline_mode<synchronous>, transform_indices = @transform_7, window_bounds = array<i64: 128, 128>}, {pipeline_mode = #tpu.pipeline_mode<synchronous>, transform_indices = @transform_8, window_bounds = array<i64: 1, 128>}, {transform_indices = @transform_9, window_bounds = array<i64: 8, 128>}]} {
    %c0 = arith.constant 0 : index
    %c0_0 = arith.constant 0 : index
    %0 = vector.load %arg1[%c0, %c0_0] : memref<8x8xi32, #tpu.memory_space<vmem>>, vector<8x8xi32>
    %c0_1 = arith.constant 0 : index
    %c0_2 = arith.constant 0 : index
    %1 = vector.load %arg2[%c0_1, %c0_2] : memref<8x8xf32, #tpu.memory_space<vmem>>, vector<8x8xf32>
    %2 = tpu.iota {dimensions = array<i32: 1>} : vector<8x128xi32>
    %cst = arith.constant 0.000000e+00 : f32
    %3 = vector.broadcast %cst : f32 to vector<8x128xf32>
    %4 = vector.extract_strided_slice %0 {offsets = [0, 0], sizes = [8, 1], strides = [1, 1]} : vector<8x8xi32> to vector<8x1xi32>
    %5 = vector.broadcast %4 : vector<8x1xi32> to vector<8x128xi32>
    %6 = arith.cmpi eq, %5, %2 : vector<8x128xi32>
    %7 = vector.extract_strided_slice %1 {offsets = [0, 0], sizes = [8, 1], strides = [1, 1]} : vector<8x8xf32> to vector<8x1xf32>
    %cst_3 = arith.constant 0.000000e+00 : f32
    %8 = vector.shape_cast %7 : vector<8x1xf32> to vector<8x1xf32>
    %9 = vector.broadcast %8 : vector<8x1xf32> to vector<8x128xf32>
    %10 = vector.broadcast %cst_3 : f32 to vector<8x128xf32>
    %11 = arith.select %6, %9, %10 : vector<8x128xi1>, vector<8x128xf32>
    %12 = arith.addf %3, %11 : vector<8x128xf32>
    %13 = vector.extract_strided_slice %0 {offsets = [0, 1], sizes = [8, 1], strides = [1, 1]} : vector<8x8xi32> to vector<8x1xi32>
    %14 = vector.broadcast %13 : vector<8x1xi32> to vector<8x128xi32>
    %15 = arith.cmpi eq, %14, %2 : vector<8x128xi32>
    %16 = vector.extract_strided_slice %1 {offsets = [0, 1], sizes = [8, 1], strides = [1, 1]} : vector<8x8xf32> to vector<8x1xf32>
    %cst_4 = arith.constant 0.000000e+00 : f32
    %17 = vector.shape_cast %16 : vector<8x1xf32> to vector<8x1xf32>
    %18 = vector.broadcast %17 : vector<8x1xf32> to vector<8x128xf32>
    %19 = vector.broadcast %cst_4 : f32 to vector<8x128xf32>
    %20 = arith.select %15, %18, %19 : vector<8x128xi1>, vector<8x128xf32>
    %21 = arith.addf %12, %20 : vector<8x128xf32>
    %22 = vector.extract_strided_slice %0 {offsets = [0, 2], sizes = [8, 1], strides = [1, 1]} : vector<8x8xi32> to vector<8x1xi32>
    %23 = vector.broadcast %22 : vector<8x1xi32> to vector<8x128xi32>
    %24 = arith.cmpi eq, %23, %2 : vector<8x128xi32>
    %25 = vector.extract_strided_slice %1 {offsets = [0, 2], sizes = [8, 1], strides = [1, 1]} : vector<8x8xf32> to vector<8x1xf32>
    %cst_5 = arith.constant 0.000000e+00 : f32
    %26 = vector.shape_cast %25 : vector<8x1xf32> to vector<8x1xf32>
    %27 = vector.broadcast %26 : vector<8x1xf32> to vector<8x128xf32>
    %28 = vector.broadcast %cst_5 : f32 to vector<8x128xf32>
    %29 = arith.select %24, %27, %28 : vector<8x128xi1>, vector<8x128xf32>
    %30 = arith.addf %21, %29 : vector<8x128xf32>
    %31 = vector.extract_strided_slice %0 {offsets = [0, 3], sizes = [8, 1], strides = [1, 1]} : vector<8x8xi32> to vector<8x1xi32>
    %32 = vector.broadcast %31 : vector<8x1xi32> to vector<8x128xi32>
    %33 = arith.cmpi eq, %32, %2 : vector<8x128xi32>
    %34 = vector.extract_strided_slice %1 {offsets = [0, 3], sizes = [8, 1], strides = [1, 1]} : vector<8x8xf32> to vector<8x1xf32>
    %cst_6 = arith.constant 0.000000e+00 : f32
    %35 = vector.shape_cast %34 : vector<8x1xf32> to vector<8x1xf32>
    %36 = vector.broadcast %35 : vector<8x1xf32> to vector<8x128xf32>
    %37 = vector.broadcast %cst_6 : f32 to vector<8x128xf32>
    %38 = arith.select %33, %36, %37 : vector<8x128xi1>, vector<8x128xf32>
    %39 = arith.addf %30, %38 : vector<8x128xf32>
    %40 = vector.extract_strided_slice %0 {offsets = [0, 4], sizes = [8, 1], strides = [1, 1]} : vector<8x8xi32> to vector<8x1xi32>
    %41 = vector.broadcast %40 : vector<8x1xi32> to vector<8x128xi32>
    %42 = arith.cmpi eq, %41, %2 : vector<8x128xi32>
    %43 = vector.extract_strided_slice %1 {offsets = [0, 4], sizes = [8, 1], strides = [1, 1]} : vector<8x8xf32> to vector<8x1xf32>
    %cst_7 = arith.constant 0.000000e+00 : f32
    %44 = vector.shape_cast %43 : vector<8x1xf32> to vector<8x1xf32>
    %45 = vector.broadcast %44 : vector<8x1xf32> to vector<8x128xf32>
    %46 = vector.broadcast %cst_7 : f32 to vector<8x128xf32>
    %47 = arith.select %42, %45, %46 : vector<8x128xi1>, vector<8x128xf32>
    %48 = arith.addf %39, %47 : vector<8x128xf32>
    %49 = vector.extract_strided_slice %0 {offsets = [0, 5], sizes = [8, 1], strides = [1, 1]} : vector<8x8xi32> to vector<8x1xi32>
    %50 = vector.broadcast %49 : vector<8x1xi32> to vector<8x128xi32>
    %51 = arith.cmpi eq, %50, %2 : vector<8x128xi32>
    %52 = vector.extract_strided_slice %1 {offsets = [0, 5], sizes = [8, 1], strides = [1, 1]} : vector<8x8xf32> to vector<8x1xf32>
    %cst_8 = arith.constant 0.000000e+00 : f32
    %53 = vector.shape_cast %52 : vector<8x1xf32> to vector<8x1xf32>
    %54 = vector.broadcast %53 : vector<8x1xf32> to vector<8x128xf32>
    %55 = vector.broadcast %cst_8 : f32 to vector<8x128xf32>
    %56 = arith.select %51, %54, %55 : vector<8x128xi1>, vector<8x128xf32>
    %57 = arith.addf %48, %56 : vector<8x128xf32>
    %58 = vector.extract_strided_slice %0 {offsets = [0, 6], sizes = [8, 1], strides = [1, 1]} : vector<8x8xi32> to vector<8x1xi32>
    %59 = vector.broadcast %58 : vector<8x1xi32> to vector<8x128xi32>
    %60 = arith.cmpi eq, %59, %2 : vector<8x128xi32>
    %61 = vector.extract_strided_slice %1 {offsets = [0, 6], sizes = [8, 1], strides = [1, 1]} : vector<8x8xf32> to vector<8x1xf32>
    %cst_9 = arith.constant 0.000000e+00 : f32
    %62 = vector.shape_cast %61 : vector<8x1xf32> to vector<8x1xf32>
    %63 = vector.broadcast %62 : vector<8x1xf32> to vector<8x128xf32>
    %64 = vector.broadcast %cst_9 : f32 to vector<8x128xf32>
    %65 = arith.select %60, %63, %64 : vector<8x128xi1>, vector<8x128xf32>
    %66 = arith.addf %57, %65 : vector<8x128xf32>
    %67 = vector.extract_strided_slice %0 {offsets = [0, 7], sizes = [8, 1], strides = [1, 1]} : vector<8x8xi32> to vector<8x1xi32>
    %68 = vector.broadcast %67 : vector<8x1xi32> to vector<8x128xi32>
    %69 = arith.cmpi eq, %68, %2 : vector<8x128xi32>
    %70 = vector.extract_strided_slice %1 {offsets = [0, 7], sizes = [8, 1], strides = [1, 1]} : vector<8x8xf32> to vector<8x1xf32>
    %cst_10 = arith.constant 0.000000e+00 : f32
    %71 = vector.shape_cast %70 : vector<8x1xf32> to vector<8x1xf32>
    %72 = vector.broadcast %71 : vector<8x1xf32> to vector<8x128xf32>
    %73 = vector.broadcast %cst_10 : f32 to vector<8x128xf32>
    %74 = arith.select %69, %72, %73 : vector<8x128xi1>, vector<8x128xf32>
    %75 = arith.addf %66, %74 : vector<8x128xf32>
    %76 = arith.truncf %75 : vector<8x128xf32> to vector<8x128xbf16>
    %c0_11 = arith.constant 0 : index
    %c0_12 = arith.constant 0 : index
    %77 = vector.load %arg3[%c0_11, %c0_12] : memref<128x128xbf16, #tpu.memory_space<vmem>>, vector<128x128xbf16>
    %cst_13 = arith.constant dense<0.000000e+00> : vector<8x128xf32>
    %78 = tpu.matmul %76, %77, %cst_13 {dimension_numbers = #tpu.dot_dimension_numbers<[1], [0], [0], [1], [0, 0, 1, 1], [], []>} : vector<8x128xbf16>, vector<128x128xbf16>, vector<8x128xf32> -> vector<8x128xf32>
    %79 = arith.truncf %78 : vector<8x128xf32> to vector<8x128xbf16>
    %c0_14 = arith.constant 0 : index
    %c0_15 = arith.constant 0 : index
    %80 = vector.load %arg4[%c0_14, %c0_15] : memref<128x128xbf16, #tpu.memory_space<vmem>>, vector<128x128xbf16>
    %cst_16 = arith.constant dense<0.000000e+00> : vector<8x128xf32>
    %81 = tpu.matmul %79, %80, %cst_16 {dimension_numbers = #tpu.dot_dimension_numbers<[1], [0], [0], [1], [0, 0, 1, 1], [], []>} : vector<8x128xbf16>, vector<128x128xbf16>, vector<8x128xf32> -> vector<8x128xf32>
    %c0_17 = arith.constant 0 : index
    %c0_18 = arith.constant 0 : index
    %82 = vector.load %arg5[%c0_17, %c0_18] : memref<1x128xf32, #tpu.memory_space<vmem>>, vector<1x128xf32>
    %83 = vector.broadcast %82 : vector<1x128xf32> to vector<8x128xf32>
    %84 = arith.addf %81, %83 : vector<8x128xf32>
    %cst_19 = arith.constant 0.000000e+00 : f32
    %85 = vector.broadcast %cst_19 : f32 to vector<8x128xf32>
    %86 = arith.maximumf %84, %85 : vector<8x128xf32>
    %87 = arith.truncf %86 : vector<8x128xf32> to vector<8x128xbf16>
    %c0_20 = arith.constant 0 : index
    %c0_21 = arith.constant 0 : index
    %88 = vector.load %arg6[%c0_20, %c0_21] : memref<128x128xbf16, #tpu.memory_space<vmem>>, vector<128x128xbf16>
    %cst_22 = arith.constant dense<0.000000e+00> : vector<8x128xf32>
    %89 = tpu.matmul %87, %88, %cst_22 {dimension_numbers = #tpu.dot_dimension_numbers<[1], [0], [0], [1], [0, 0, 1, 1], [], []>} : vector<8x128xbf16>, vector<128x128xbf16>, vector<8x128xf32> -> vector<8x128xf32>
    %c0_23 = arith.constant 0 : index
    %c0_24 = arith.constant 0 : index
    %90 = vector.load %arg7[%c0_23, %c0_24] : memref<1x128xf32, #tpu.memory_space<vmem>>, vector<1x128xf32>
    %91 = vector.broadcast %90 : vector<1x128xf32> to vector<8x128xf32>
    %92 = arith.addf %89, %91 : vector<8x128xf32>
    %cst_25 = arith.constant 0.000000e+00 : f32
    %93 = vector.broadcast %cst_25 : f32 to vector<8x128xf32>
    %94 = arith.maximumf %92, %93 : vector<8x128xf32>
    %95 = arith.truncf %94 : vector<8x128xf32> to vector<8x128xbf16>
    %c0_26 = arith.constant 0 : index
    %c0_27 = arith.constant 0 : index
    %96 = vector.load %arg8[%c0_26, %c0_27] : memref<128x128xbf16, #tpu.memory_space<vmem>>, vector<128x128xbf16>
    %cst_28 = arith.constant dense<0.000000e+00> : vector<8x128xf32>
    %97 = tpu.matmul %95, %96, %cst_28 {dimension_numbers = #tpu.dot_dimension_numbers<[1], [0], [0], [1], [0, 0, 1, 1], [], []>} : vector<8x128xbf16>, vector<128x128xbf16>, vector<8x128xf32> -> vector<8x128xf32>
    %c0_29 = arith.constant 0 : index
    %c0_30 = arith.constant 0 : index
    %98 = vector.load %arg9[%c0_29, %c0_30] : memref<1x128xf32, #tpu.memory_space<vmem>>, vector<1x128xf32>
    %99 = vector.broadcast %98 : vector<1x128xf32> to vector<8x128xf32>
    %100 = arith.addf %97, %99 : vector<8x128xf32>
    %c0_31 = arith.constant 0 : index
    %c0_32 = arith.constant 0 : index
    %101 = vector.load %arg10[%c0_31, %c0_32] : memref<8x128xf32, #tpu.memory_space<vmem>>, vector<8x128xf32>
    tpu.vector_store %arg10[%c0_31, %c0_32], %100 {strides = array<i32>} : memref<8x128xf32, #tpu.memory_space<vmem>>, vector<8x128xf32>,
    return
  }
  func.func @transform_0(%arg0: i32) -> (i32, i32) {
    %c0_i32 = arith.constant 0 : i32
    %c0_i32_0 = arith.constant 0 : i32
    return %arg0, %c0_i32 : i32, i32
  }
  func.func @transform_1(%arg0: i32) -> (i32, i32) {
    %c0_i32 = arith.constant 0 : i32
    %c0_i32_0 = arith.constant 0 : i32
    return %arg0, %c0_i32 : i32, i32
  }
  func.func @transform_2(%arg0: i32) -> (i32, i32) {
    %c0_i32 = arith.constant 0 : i32
    %c0_i32_0 = arith.constant 0 : i32
    %c0_i32_1 = arith.constant 0 : i32
    return %c0_i32, %c0_i32_0 : i32, i32
  }
  func.func @transform_3(%arg0: i32) -> (i32, i32) {
    %c0_i32 = arith.constant 0 : i32
    %c0_i32_0 = arith.constant 0 : i32
    %c0_i32_1 = arith.constant 0 : i32
    return %c0_i32, %c0_i32_0 : i32, i32
  }
  func.func @transform_4(%arg0: i32) -> (i32, i32) {
    %c0_i32 = arith.constant 0 : i32
    %c0_i32_0 = arith.constant 0 : i32
    %c0_i32_1 = arith.constant 0 : i32
    return %c0_i32, %c0_i32_0 : i32, i32
  }
  func.func @transform_5(%arg0: i32) -> (i32, i32) {
    %c0_i32 = arith.constant 0 : i32
    %c0_i32_0 = arith.constant 0 : i32
    %c0_i32_1 = arith.constant 0 : i32
    return %c0_i32, %c0_i32_0 : i32, i32
  }
  func.func @transform_6(%arg0: i32) -> (i32, i32) {
    %c0_i32 = arith.constant 0 : i32
    %c0_i32_0 = arith.constant 0 : i32
    %c0_i32_1 = arith.constant 0 : i32
    return %c0_i32, %c0_i32_0 : i32, i32
  }
  func.func @transform_7(%arg0: i32) -> (i32, i32) {
    %c0_i32 = arith.constant 0 : i32
    %c0_i32_0 = arith.constant 0 : i32
    %c0_i32_1 = arith.constant 0 : i32
    return %c0_i32, %c0_i32_0 : i32, i32
  }
  func.func @transform_8(%arg0: i32) -> (i32, i32) {
    %c0_i32 = arith.constant 0 : i32
    %c0_i32_0 = arith.constant 0 : i32
    %c0_i32_1 = arith.constant 0 : i32
    return %c0_i32, %c0_i32_0 : i32, i32
  }
  func.func @transform_9(%arg0: i32) -> (i32, i32) {
    %c0_i32 = arith.constant 0 : i32
    %c0_i32_0 = arith.constant 0 : i32
    return %arg0, %c0_i32 : i32, i32
  }
}

module attributes {stable_mosaic.version = 11 : i64} {
  func.func @embnet_kernel(%arg0: i32, %arg1: memref<8x8xi32, #tpu.memory_space<vmem>>, %arg2: memref<8x8xf32, #tpu.memory_space<vmem>>, %arg3: memref<128x128xbf16, #tpu.memory_space<vmem>>, %arg4: memref<128x128xbf16, #tpu.memory_space<vmem>>, %arg5: memref<1x128xf32, #tpu.memory_space<vmem>>, %arg6: memref<128x128xbf16, #tpu.memory_space<vmem>>, %arg7: memref<1x128xf32, #tpu.memory_space<vmem>>, %arg8: memref<128x128xbf16, #tpu.memory_space<vmem>>, %arg9: memref<1x128xf32, #tpu.memory_space<vmem>>, %arg10: memref<8x128xf32, #tpu.memory_space<vmem>>) attributes {dimension_semantics = [#tpu.dimension_semantics<parallel>], iteration_bounds = array<i64: 1>, scalar_prefetch = 0 : i64, scratch_operands = 0 : i64, tpu.core_type = #tpu.core_type<tc>, window_params = [{transform_indices = @transform_0, window_bounds = array<i64: 8, 8>}, {transform_indices = @transform_1, window_bounds = array<i64: 8, 8>}, {pipeline_mode = #tpu.pipeline_mode<synchronous>, transform_indices = @transform_2, window_bounds = array<i64: 128, 128>}, {pipeline_mode = #tpu.pipeline_mode<synchronous>, transform_indices = @transform_3, window_bounds = array<i64: 128, 128>}, {pipeline_mode = #tpu.pipeline_mode<synchronous>, transform_indices = @transform_4, window_bounds = array<i64: 1, 128>}, {pipeline_mode = #tpu.pipeline_mode<synchronous>, transform_indices = @transform_5, window_bounds = array<i64: 128, 128>}, {pipeline_mode = #tpu.pipeline_mode<synchronous>, transform_indices = @transform_6, window_bounds = array<i64: 1, 128>}, {pipeline_mode = #tpu.pipeline_mode<synchronous>, transform_indices = @transform_7, window_bounds = array<i64: 128, 128>}, {pipeline_mode = #tpu.pipeline_mode<synchronous>, transform_indices = @transform_8, window_bounds = array<i64: 1, 128>}, {transform_indices = @transform_9, window_bounds = array<i64: 8, 128>}]} {
    %c0 = arith.constant 0 : index
    %c0_0 = arith.constant 0 : index
    %0 = vector.load %arg1[%c0, %c0_0] : memref<8x8xi32, #tpu.memory_space<vmem>>, vector<8x8xi32>
    %c0_1 = arith.constant 0 : index
    %c0_2 = arith.constant 0 : index
    %1 = vector.load %arg2[%c0_1, %c0_2] : memref<8x8xf32, #tpu.memory_space<vmem>>, vector<8x8xf32>
    %2 = tpu.iota {dimensions = array<i32: 1>} : vector<8x128xi32>
    %cst = arith.constant 0.000000e+00 : f32
    %3 = vector.broadcast %cst : f32 to vector<8x128xf32>
    %4 = vector.extract_strided_slice %0 {offsets = [0, 0], sizes = [8, 1], strides = [1, 1]} : vector<8x8xi32> to vector<8x1xi32>
    %5 = vector.broadcast %4 : vector<8x1xi32> to vector<8x128xi32>
    %6 = arith.cmpi eq, %5, %2 : vector<8x128xi32>
    %7 = vector.extract_strided_slice %1 {offsets = [0, 0], sizes = [8, 1], strides = [1, 1]} : vector<8x8xf32> to vector<8x1xf32>
    %cst_3 = arith.constant 0.000000e+00 : f32
    %8 = vector.shape_cast %7 : vector<8x1xf32> to vector<8x1xf32>
    %9 = vector.broadcast %8 : vector<8x1xf32> to vector<8x128xf32>
    %10 = vector.broadcast %cst_3 : f32 to vector<8x128xf32>
    %11 = arith.select %6, %9, %10 : vector<8x128xi1>, vector<8x128xf32>
    %12 = arith.addf %3, %11 : vector<8x128xf32>
    %13 = vector.extract_strided_slice %0 {offsets = [0, 1], sizes = [8, 1], strides = [1, 1]} : vector<8x8xi32> to vector<8x1xi32>
    %14 = vector.broadcast %13 : vector<8x1xi32> to vector<8x128xi32>
    %15 = arith.cmpi eq, %14, %2 : vector<8x128xi32>
    %16 = vector.extract_strided_slice %1 {offsets = [0, 1], sizes = [8, 1], strides = [1, 1]} : vector<8x8xf32> to vector<8x1xf32>
    %cst_4 = arith.constant 0.000000e+00 : f32
    %17 = vector.shape_cast %16 : vector<8x1xf32> to vector<8x1xf32>
    %18 = vector.broadcast %17 : vector<8x1xf32> to vector<8x128xf32>
    %19 = vector.broadcast %cst_4 : f32 to vector<8x128xf32>
    %20 = arith.select %15, %18, %19 : vector<8x128xi1>, vector<8x128xf32>
    %21 = arith.addf %12, %20 : vector<8x128xf32>
    %22 = vector.extract_strided_slice %0 {offsets = [0, 2], sizes = [8, 1], strides = [1, 1]} : vector<8x8xi32> to vector<8x1xi32>
    %23 = vector.broadcast %22 : vector<8x1xi32> to vector<8x128xi32>
    %24 = arith.cmpi eq, %23, %2 : vector<8x128xi32>
    %25 = vector.extract_strided_slice %1 {offsets = [0, 2], sizes = [8, 1], strides = [1, 1]} : vector<8x8xf32> to vector<8x1xf32>
    %cst_5 = arith.constant 0.000000e+00 : f32
    %26 = vector.shape_cast %25 : vector<8x1xf32> to vector<8x1xf32>
    %27 = vector.broadcast %26 : vector<8x1xf32> to vector<8x128xf32>
    %28 = vector.broadcast %cst_5 : f32 to vector<8x128xf32>
    %29 = arith.select %24, %27, %28 : vector<8x128xi1>, vector<8x128xf32>
    %30 = arith.addf %21, %29 : vector<8x128xf32>
    %31 = vector.extract_strided_slice %0 {offsets = [0, 3], sizes = [8, 1], strides = [1, 1]} : vector<8x8xi32> to vector<8x1xi32>
    %32 = vector.broadcast %31 : vector<8x1xi32> to vector<8x128xi32>
    %33 = arith.cmpi eq, %32, %2 : vector<8x128xi32>
    %34 = vector.extract_strided_slice %1 {offsets = [0, 3], sizes = [8, 1], strides = [1, 1]} : vector<8x8xf32> to vector<8x1xf32>
    %cst_6 = arith.constant 0.000000e+00 : f32
    %35 = vector.shape_cast %34 : vector<8x1xf32> to vector<8x1xf32>
    %36 = vector.broadcast %35 : vector<8x1xf32> to vector<8x128xf32>
    %37 = vector.broadcast %cst_6 : f32 to vector<8x128xf32>
    %38 = arith.select %33, %36, %37 : vector<8x128xi1>, vector<8x128xf32>
    %39 = arith.addf %30, %38 : vector<8x128xf32>
    %40 = vector.extract_strided_slice %0 {offsets = [0, 4], sizes = [8, 1], strides = [1, 1]} : vector<8x8xi32> to vector<8x1xi32>
    %41 = vector.broadcast %40 : vector<8x1xi32> to vector<8x128xi32>
    %42 = arith.cmpi eq, %41, %2 : vector<8x128xi32>
    %43 = vector.extract_strided_slice %1 {offsets = [0, 4], sizes = [8, 1], strides = [1, 1]} : vector<8x8xf32> to vector<8x1xf32>
    %cst_7 = arith.constant 0.000000e+00 : f32
    %44 = vector.shape_cast %43 : vector<8x1xf32> to vector<8x1xf32>
    %45 = vector.broadcast %44 : vector<8x1xf32> to vector<8x128xf32>
    %46 = vector.broadcast %cst_7 : f32 to vector<8x128xf32>
    %47 = arith.select %42, %45, %46 : vector<8x128xi1>, vector<8x128xf32>
    %48 = arith.addf %39, %47 : vector<8x128xf32>
    %49 = vector.extract_strided_slice %0 {offsets = [0, 5], sizes = [8, 1], strides = [1, 1]} : vector<8x8xi32> to vector<8x1xi32>
    %50 = vector.broadcast %49 : vector<8x1xi32> to vector<8x128xi32>
    %51 = arith.cmpi eq, %50, %2 : vector<8x128xi32>
    %52 = vector.extract_strided_slice %1 {offsets = [0, 5], sizes = [8, 1], strides = [1, 1]} : vector<8x8xf32> to vector<8x1xf32>
    %cst_8 = arith.constant 0.000000e+00 : f32
    %53 = vector.shape_cast %52 : vector<8x1xf32> to vector<8x1xf32>
    %54 = vector.broadcast %53 : vector<8x1xf32> to vector<8x128xf32>
    %55 = vector.broadcast %cst_8 : f32 to vector<8x128xf32>
    %56 = arith.select %51, %54, %55 : vector<8x128xi1>, vector<8x128xf32>
    %57 = arith.addf %48, %56 : vector<8x128xf32>
    %58 = vector.extract_strided_slice %0 {offsets = [0, 6], sizes = [8, 1], strides = [1, 1]} : vector<8x8xi32> to vector<8x1xi32>
    %59 = vector.broadcast %58 : vector<8x1xi32> to vector<8x128xi32>
    %60 = arith.cmpi eq, %59, %2 : vector<8x128xi32>
    %61 = vector.extract_strided_slice %1 {offsets = [0, 6], sizes = [8, 1], strides = [1, 1]} : vector<8x8xf32> to vector<8x1xf32>
    %cst_9 = arith.constant 0.000000e+00 : f32
    %62 = vector.shape_cast %61 : vector<8x1xf32> to vector<8x1xf32>
    %63 = vector.broadcast %62 : vector<8x1xf32> to vector<8x128xf32>
    %64 = vector.broadcast %cst_9 : f32 to vector<8x128xf32>
    %65 = arith.select %60, %63, %64 : vector<8x128xi1>, vector<8x128xf32>
    %66 = arith.addf %57, %65 : vector<8x128xf32>
    %67 = vector.extract_strided_slice %0 {offsets = [0, 7], sizes = [8, 1], strides = [1, 1]} : vector<8x8xi32> to vector<8x1xi32>
    %68 = vector.broadcast %67 : vector<8x1xi32> to vector<8x128xi32>
    %69 = arith.cmpi eq, %68, %2 : vector<8x128xi32>
    %70 = vector.extract_strided_slice %1 {offsets = [0, 7], sizes = [8, 1], strides = [1, 1]} : vector<8x8xf32> to vector<8x1xf32>
    %cst_10 = arith.constant 0.000000e+00 : f32
    %71 = vector.shape_cast %70 : vector<8x1xf32> to vector<8x1xf32>
    %72 = vector.broadcast %71 : vector<8x1xf32> to vector<8x128xf32>
    %73 = vector.broadcast %cst_10 : f32 to vector<8x128xf32>
    %74 = arith.select %69, %72, %73 : vector<8x128xi1>, vector<8x128xf32>
    %75 = arith.addf %66, %74 : vector<8x128xf32>
    %76 = arith.truncf %75 : vector<8x128xf32> to vector<8x128xbf16>
    %c0_11 = arith.constant 0 : index
    %c0_12 = arith.constant 0 : index
    %77 = vector.load %arg3[%c0_11, %c0_12] : memref<128x128xbf16, #tpu.memory_space<vmem>>, vector<128x128xbf16>
    %cst_13 = arith.constant dense<0.000000e+00> : vector<8x128xf32>
    %78 = tpu.matmul %76, %77, %cst_13 {dimension_numbers = #tpu.dot_dimension_numbers<[1], [0], [0], [1], [0, 0, 1, 1], [], []>} : vector<8x128xbf16>, vector<128x128xbf16>, vector<8x128xf32> -> vector<8x128xf32>
    %79 = arith.truncf %78 : vector<8x128xf32> to vector<8x128xbf16>
    %c0_14 = arith.constant 0 : index
    %c0_15 = arith.constant 0 : index
    %80 = vector.load %arg4[%c0_14, %c0_15] : memref<128x128xbf16, #tpu.memory_space<vmem>>, vector<128x128xbf16>
    %cst_16 = arith.constant dense<0.000000e+00> : vector<8x128xf32>
    %81 = tpu.matmul %79, %80, %cst_16 {dimension_numbers = #tpu.dot_dimension_numbers<[1], [0], [0], [1], [0, 0, 1, 1], [], []>} : vector<8x128xbf16>, vector<128x128xbf16>, vector<8x128xf32> -> vector<8x128xf32>
    %c0_17 = arith.constant 0 : index
    %c0_18 = arith.constant 0 : index
    %82 = vector.load %arg5[%c0_17, %c0_18] : memref<1x128xf32, #tpu.memory_space<vmem>>, vector<1x128xf32>
    %83 = vector.broadcast %82 : vector<1x128xf32> to vector<8x128xf32>
    %84 = arith.addf %81, %83 : vector<8x128xf32>
    %cst_19 = arith.constant 0.000000e+00 : f32
    %85 = vector.broadcast %cst_19 : f32 to vector<8x128xf32>
    %86 = arith.maximumf %84, %85 : vector<8x128xf32>
    %87 = arith.truncf %86 : vector<8x128xf32> to vector<8x128xbf16>
    %c0_20 = arith.constant 0 : index
    %c0_21 = arith.constant 0 : index
    %88 = vector.load %arg6[%c0_20, %c0_21] : memref<128x128xbf16, #tpu.memory_space<vmem>>, vector<128x128xbf16>
    %cst_22 = arith.constant dense<0.000000e+00> : vector<8x128xf32>
    %89 = tpu.matmul %87, %88, %cst_22 {dimension_numbers = #tpu.dot_dimension_numbers<[1], [0], [0], [1], [0, 0, 1, 1], [], []>} : vector<8x128xbf16>, vector<128x128xbf16>, vector<8x128xf32> -> vector<8x128xf32>
    %c0_23 = arith.constant 0 : index
    %c0_24 = arith.constant 0 : index
    %90 = vector.load %arg7[%c0_23, %c0_24] : memref<1x128xf32, #tpu.memory_space<vmem>>, vector<1x128xf32>
    %91 = vector.broadcast %90 : vector<1x128xf32> to vector<8x128xf32>
    %92 = arith.addf %89, %91 : vector<8x128xf32>
    %cst_25 = arith.constant 0.000000e+00 : f32
    %93 = vector.broadcast %cst_25 : f32 to vector<8x128xf32>
    %94 = arith.maximumf %92, %93 : vector<8x128xf32>
    %95 = arith.truncf %94 : vector<8x128xf32> to vector<8x128xbf16>
    %c0_26 = arith.constant 0 : index
    %c0_27 = arith.constant 0 : index
    %96 = vector.load %arg8[%c0_26, %c0_27] : memref<128x128xbf16, #tpu.memory_space<vmem>>, vector<128x128xbf16>
    %cst_28 = arith.constant dense<0.000000e+00> : vector<8x128xf32>
    %97 = tpu.matmul %95, %96, %cst_28 {dimension_numbers = #tpu.dot_dimension_numbers<[1], [0], [0], [1], [0, 0, 1, 1], [], []>} : vector<8x128xbf16>, vector<128x128xbf16>, vector<8x128xf32> -> vector<8x128xf32>
    %c0_29 = arith.constant 0 : index
    %c0_30 = arith.constant 0 : index
    %98 = vector.load %arg9[%c0_29, %c0_30] : memref<1x128xf32, #tpu.memory_space<vmem>>, vector<1x128xf32>
    %99 = vector.broadcast %98 : vector<1x128xf32> to vector<8x128xf32>
    %100 = arith.addf %97, %99 : vector<8x128xf32>
    %c0_31 = arith.constant 0 : index
    %c0_32 = arith.constant 0 : index
    %101 = vector.load %arg10[%c0_31, %c0_32] : memref<8x128xf32, #tpu.memory_space<vmem>>, vector<8x128xf32>
    tpu.vector_store %arg10[%c0_31, %c0_32], %100 {strides = array<i32>} : memref<8x128xf32, #tpu.memory_space<vmem>>, vector<8x128xf32>,
    return
  }
  func.func @transform_0(%arg0: i32) -> (i32, i32) {
    %c0_i32 = arith.constant 0 : i32
    %c0_i32_0 = arith.constant 0 : i32
    return %arg0, %c0_i32 : i32, i32
  }
  func.func @transform_1(%arg0: i32) -> (i32, i32) {
    %c0_i32 = arith.constant 0 : i32
    %c0_i32_0 = arith.constant 0 : i32
    return %arg0, %c0_i32 : i32, i32
  }
  func.func @transform_2(%arg0: i32) -> (i32, i32) {
    %c0_i32 = arith.constant 0 : i32
    %c0_i32_0 = arith.constant 0 : i32
    %c0_i32_1 = arith.constant 0 : i32
    return %c0_i32, %c0_i32_0 : i32, i32
  }
  func.func @transform_3(%arg0: i32) -> (i32, i32) {
    %c0_i32 = arith.constant 0 : i32
    %c0_i32_0 = arith.constant 0 : i32
    %c0_i32_1 = arith.constant 0 : i32
    return %c0_i32, %c0_i32_0 : i32, i32
  }
  func.func @transform_4(%arg0: i32) -> (i32, i32) {
    %c0_i32 = arith.constant 0 : i32
    %c0_i32_0 = arith.constant 0 : i32
    %c0_i32_1 = arith.constant 0 : i32
    return %c0_i32, %c0_i32_0 : i32, i32
  }
  func.func @transform_5(%arg0: i32) -> (i32, i32) {
    %c0_i32 = arith.constant 0 : i32
    %c0_i32_0 = arith.constant 0 : i32
    %c0_i32_1 = arith.constant 0 : i32
    return %c0_i32, %c0_i32_0 : i32, i32
  }
  func.func @transform_6(%arg0: i32) -> (i32, i32) {
    %c0_i32 = arith.constant 0 : i32
    %c0_i32_0 = arith.constant 0 : i32
    %c0_i32_1 = arith.constant 0 : i32
    return %c0_i32, %c0_i32_0 : i32, i32
  }
  func.func @transform_7(%arg0: i32) -> (i32, i32) {
    %c0_i32 = arith.constant 0 : i32
    %c0_i32_0 = arith.constant 0 : i32
    %c0_i32_1 = arith.constant 0 : i32
    return %c0_i32, %c0_i32_0 : i32, i32
  }
  func.func @transform_8(%arg0: i32) -> (i32, i32) {
    %c0_i32 = arith.constant 0 : i32
    %c0_i32_0 = arith.constant 0 : i32
    %c0_i32_1 = arith.constant 0 : i32
    return %c0_i32, %c0_i32_0 : i32, i32
  }
  func.func @transform_9(%arg0: i32) -> (i32, i32) {
    %c0_i32 = arith.constant 0 : i32
    %c0_i32_0 = arith.constant 0 : i32
    return %arg0, %c0_i32 : i32, i32
  }
}

</mosaic_0001>

<llo_original>
// kernel: _embnet_forward_impl.1
$region0: #{_embnet_forward_impl.1}
  #allocation0 [shape = 'u32[]', space=smem, size = 0x4, offset = 0x4, fixed_abs, tag = 'smem constant byte address 0x4 - core index']
  #allocation1 [shape = 'u32[144,128]{1,0:T(1,128)}', space=vmem, size = 0x12000, scoped, tag = 'internal scratch']
  %s0 = inlined_call_operand.vmem [shape: s32[8,8], index: 0, kind: input, shape index: {}]
  %s1 = inlined_call_operand.vmem [shape: f32[8,8], index: 1, kind: input, shape index: {}]
  %s2 = inlined_call_operand.vmem [shape: bf16[128,128], index: 2, kind: input, shape index: {}]
  %s3 = inlined_call_operand.vmem [shape: bf16[128,128], index: 3, kind: input, shape index: {}]
  %s4 = inlined_call_operand.vmem [shape: f32[1,128], index: 4, kind: input, shape index: {}]
  %s5 = inlined_call_operand.vmem [shape: bf16[128,128], index: 5, kind: input, shape index: {}]
  %s6 = inlined_call_operand.vmem [shape: f32[1,128], index: 6, kind: input, shape index: {}]
  %s7 = inlined_call_operand.vmem [shape: bf16[128,128], index: 7, kind: input, shape index: {}]
  %s8 = inlined_call_operand.vmem [shape: f32[1,128], index: 8, kind: input, shape index: {}]
  %s9 = inlined_call_operand.vmem [shape: f32[8,128], index: 9, kind: output, shape index: {}]
  %s10 = sld [smem:[#allocation0]]
  $region46: #{_embnet_forward_impl.1} parent=0
    _
  %s12 = ssub.s32 1, %s10
  %s13 = scalar_select 0, %s12, %s10
  // Predicated region
  $region2: #{_embnet_forward_impl.1} parent=0 // pred_check
    _
  $region3: #{_embnet_forward_impl.1} parent=0 // pred_check_branch
    %15 = sbr.rel (0) target = $region5
  $region4: #{_embnet_forward_impl.1} parent=0 // pred_region
    _
  $region5: #{_embnet_forward_impl.1} parent=0 // pred_fallthru
    _
  // Predicated region
  $region6: #{_embnet_forward_impl.1} parent=0 // pred_check
    _
  $region7: #{_embnet_forward_impl.1} parent=0 // pred_check_branch
    %17 = sbr.rel (0) target = $region9
  $region8: #{_embnet_forward_impl.1} parent=0 // pred_region
    _
  $region9: #{_embnet_forward_impl.1} parent=0 // pred_fallthru
    _
  // Predicated region
  $region10: #{_embnet_forward_impl.1} parent=0 // pred_check
    _
  $region11: #{_embnet_forward_impl.1} parent=0 // pred_check_branch
    %19 = sbr.rel (0) target = $region13
  $region12: #{_embnet_forward_impl.1} parent=0 // pred_region
    _
  $region13: #{_embnet_forward_impl.1} parent=0 // pred_fallthru
    _
  // Predicated region
  $region14: #{_embnet_forward_impl.1} parent=0 // pred_check
    _
  $region15: #{_embnet_forward_impl.1} parent=0 // pred_check_branch
    %21 = sbr.rel (0) target = $region17
  $region16: #{_embnet_forward_impl.1} parent=0 // pred_region
    _
  $region17: #{_embnet_forward_impl.1} parent=0 // pred_fallthru
    _
  // Predicated region
  $region18: #{_embnet_forward_impl.1} parent=0 // pred_check
    _
  $region19: #{_embnet_forward_impl.1} parent=0 // pred_check_branch
    %23 = sbr.rel (0) target = $region21
  $region20: #{_embnet_forward_impl.1} parent=0 // pred_region
    _
  $region21: #{_embnet_forward_impl.1} parent=0 // pred_fallthru
    _
  // Predicated region
  $region22: #{_embnet_forward_impl.1} parent=0 // pred_check
    _
  $region23: #{_embnet_forward_impl.1} parent=0 // pred_check_branch
    %25 = sbr.rel (0) target = $region25
  $region24: #{_embnet_forward_impl.1} parent=0 // pred_region
    _
  $region25: #{_embnet_forward_impl.1} parent=0 // pred_fallthru
    _
  // Predicated region
  $region26: #{_embnet_forward_impl.1} parent=0 // pred_check
    _
  $region27: #{_embnet_forward_impl.1} parent=0 // pred_check_branch
    %27 = sbr.rel (0) target = $region29
  $region28: #{_embnet_forward_impl.1} parent=0 // pred_region
    _
  $region29: #{_embnet_forward_impl.1} parent=0 // pred_fallthru
    _
  // Predicated region
  $region30: #{_embnet_forward_impl.1} parent=0 // pred_check
    _
  $region31: #{_embnet_forward_impl.1} parent=0 // pred_check_branch
    %29 = sbr.rel (0) target = $region33
  $region32: #{_embnet_forward_impl.1} parent=0 // pred_region
    _
  $region33: #{_embnet_forward_impl.1} parent=0 // pred_fallthru
    _
  // Predicated region
  $region34: #{_embnet_forward_impl.1} parent=0 // pred_check
    _
  $region35: #{_embnet_forward_impl.1} parent=0 // pred_check_branch
    %31 = sbr.rel (0) target = $region37
  $region36: #{_embnet_forward_impl.1} parent=0 // pred_region
    _
  $region37: #{_embnet_forward_impl.1} parent=0 // pred_fallthru
    _
  %v33 = vld [vmem:[%s0] sm:$0xff]
  %v34 = vld [vmem:[%s1] sm:$0xff]
  %v35 = vlaneseq
  %v36 = vand.u32 %v35, 127
  %37 = vset.pattern.permute.xlu0 0
  %38 = vperm.xlu0 %37, %v33
  %v39 = vpop.permute.xlu0 %38
  %vm40 = vcmp.eq.s32.totalorder %v39, %v36
  %42 = vset.pattern.permute.xlu0 0
  %43 = vperm.xlu0 %42, %v34
  %v44 = vpop.permute.xlu0 %43
  %v46 = vsel %vm40, %v44, 0.0
  %v47 = vadd.f32 %v46, 0.0
  %48 = vset.pattern.permute.xlu0 1
  %49 = vperm.xlu0 %48, %v33
  %v50 = vpop.permute.xlu0 %49
  %vm51 = vcmp.eq.s32.totalorder %v50, %v36
  %52 = vset.pattern.permute.xlu0 1
  %53 = vperm.xlu0 %52, %v34
  %v54 = vpop.permute.xlu0 %53
  %v56 = vsel %vm51, %v54, 0.0
  %v57 = vadd.f32 %v47, %v56
  %58 = vset.pattern.permute.xlu0 2
  %59 = vperm.xlu0 %58, %v33
  %v60 = vpop.permute.xlu0 %59
  %vm61 = vcmp.eq.s32.totalorder %v60, %v36
  %62 = vset.pattern.permute.xlu0 2
  %63 = vperm.xlu0 %62, %v34
  %v64 = vpop.permute.xlu0 %63
  %v66 = vsel %vm61, %v64, 0.0
  %v67 = vadd.f32 %v57, %v66
  %68 = vset.pattern.permute.xlu0 3
  %69 = vperm.xlu0 %68, %v33
  %v70 = vpop.permute.xlu0 %69
  %vm71 = vcmp.eq.s32.totalorder %v70, %v36
  %72 = vset.pattern.permute.xlu0 3
  %73 = vperm.xlu0 %72, %v34
  %v74 = vpop.permute.xlu0 %73
  %v76 = vsel %vm71, %v74, 0.0
  %v77 = vadd.f32 %v67, %v76
  %78 = vset.pattern.permute.xlu0 4
  %79 = vperm.xlu0 %78, %v33
  %v80 = vpop.permute.xlu0 %79
  %vm81 = vcmp.eq.s32.totalorder %v80, %v36
  %82 = vset.pattern.permute.xlu0 4
  %83 = vperm.xlu0 %82, %v34
  %v84 = vpop.permute.xlu0 %83
  %v86 = vsel %vm81, %v84, 0.0
  %v87 = vadd.f32 %v77, %v86
  %88 = vset.pattern.permute.xlu0 5
  %89 = vperm.xlu0 %88, %v33
  %v90 = vpop.permute.xlu0 %89
  %vm91 = vcmp.eq.s32.totalorder %v90, %v36
  %92 = vset.pattern.permute.xlu0 5
  %93 = vperm.xlu0 %92, %v34
  %v94 = vpop.permute.xlu0 %93
  %v96 = vsel %vm91, %v94, 0.0
  %v97 = vadd.f32 %v87, %v96
  %98 = vset.pattern.permute.xlu0 6
  %99 = vperm.xlu0 %98, %v33
  %v100 = vpop.permute.xlu0 %99
  %vm101 = vcmp.eq.s32.totalorder %v100, %v36
  %102 = vset.pattern.permute.xlu0 6
  %103 = vperm.xlu0 %102, %v34
  %v104 = vpop.permute.xlu0 %103
  %v106 = vsel %vm101, %v104, 0.0
  %v107 = vadd.f32 %v97, %v106
  %108 = vset.pattern.permute.xlu0 7
  %109 = vperm.xlu0 %108, %v33
  %v110 = vpop.permute.xlu0 %109
  %vm111 = vcmp.eq.s32.totalorder %v110, %v36
  %112 = vset.pattern.permute.xlu0 7
  %113 = vperm.xlu0 %112, %v34
  %v114 = vpop.permute.xlu0 %113
  %v116 = vsel %vm111, %v114, 0.0
  %v117 = vadd.f32 %v107, %v116
  %v118 = vpack.c.bf16 %v117, %v117
  %v119 = vld [vmem:[%s2] sm:$0xf]
  %v120 = vld [vmem:[%s2 + $0x4] sm:$0xf]
  %v121 = vld [vmem:[%s2 + $0x8] sm:$0xf]
  %v122 = vld [vmem:[%s2 + $0xc] sm:$0xf]
  %v123 = vld [vmem:[%s2 + $0x10] sm:$0xf]
  %v124 = vld [vmem:[%s2 + $0x14] sm:$0xf]
  %v125 = vld [vmem:[%s2 + $0x18] sm:$0xf]
  %v126 = vld [vmem:[%s2 + $0x1c] sm:$0xf]
  %v127 = vld [vmem:[%s2 + $0x20] sm:$0xf]
  %v128 = vld [vmem:[%s2 + $0x24] sm:$0xf]
  %v129 = vld [vmem:[%s2 + $0x28] sm:$0xf]
  %v130 = vld [vmem:[%s2 + $0x2c] sm:$0xf]
  %v131 = vld [vmem:[%s2 + $0x30] sm:$0xf]
  %v132 = vld [vmem:[%s2 + $0x34] sm:$0xf]
  %v133 = vld [vmem:[%s2 + $0x38] sm:$0xf]
  %v134 = vld [vmem:[%s2 + $0x3c] sm:$0xf]
  %v151 = vunpack.c.l.b16 %v119
  %v152 = vunpack.c.l.b16 %v120
  %v153 = vunpack.c.l.b16 %v121
  %v154 = vunpack.c.l.b16 %v122
  %v155 = vunpack.c.l.b16 %v123
  %v156 = vunpack.c.l.b16 %v124
  %v157 = vunpack.c.l.b16 %v125
  %v158 = vunpack.c.l.b16 %v126
  %v159 = vunpack.c.l.b16 %v127
  %v160 = vunpack.c.l.b16 %v128
  %v161 = vunpack.c.l.b16 %v129
  %v162 = vunpack.c.l.b16 %v130
  %v163 = vunpack.c.l.b16 %v131
  %v164 = vunpack.c.l.b16 %v132
  %v165 = vunpack.c.l.b16 %v133
  %v166 = vunpack.c.l.b16 %v134
  %v167 = vpack.c.b16 %v152, %v151
  %v168 = vpack.c.b16 %v154, %v153
  %v169 = vpack.c.b16 %v156, %v155
  %v170 = vpack.c.b16 %v158, %v157
  %v171 = vpack.c.b16 %v160, %v159
  %v172 = vpack.c.b16 %v162, %v161
  %v173 = vpack.c.b16 %v164, %v163
  %v174 = vpack.c.b16 %v166, %v165
  %183 = vmatprep.subr.bf16.mxu0 0
  %184 = vmatpush1.bf16.msra.mxu0 %v174
  %185 = vmatprep.subr.bf16.mxu0 0
  %186 = vmatpush1.bf16.msra.mxu0 %v173
  %187 = vmatprep.subr.bf16.mxu0 0
  %188 = vmatpush1.bf16.msra.mxu0 %v172
  %189 = vmatprep.subr.bf16.mxu0 0
  %190 = vmatpush1.bf16.msra.mxu0 %v171
  %191 = vmatprep.subr.bf16.mxu0 0
  %192 = vmatpush1.bf16.msra.mxu0 %v170
  %193 = vmatprep.subr.bf16.mxu0 0
  %194 = vmatpush1.bf16.msra.mxu0 %v169
  %195 = vmatprep.subr.bf16.mxu0 0
  %196 = vmatpush1.bf16.msra.mxu0 %v168
  %197 = vmatprep.subr.bf16.mxu0 0
  %198 = vmatpush1.bf16.msra.mxu0 %v167
  %199 = vmatprep.subr.bf16.mxu0 0
  %200 = vmatpush2.bf16.msra.mxu0 0
  %201 = vmatprep.subr.bf16.mxu0 0
  %202 = vmatpush2.bf16.msra.mxu0 0
  %203 = vmatprep.subr.bf16.mxu0 0
  %204 = vmatpush2.bf16.msra.mxu0 0
  %205 = vmatprep.subr.bf16.mxu0 0
  %206 = vmatpush2.bf16.msra.mxu0 0
  %207 = vmatprep.subr.bf16.mxu0 0
  %208 = vmatpush2.bf16.msra.mxu0 0
  %209 = vmatprep.subr.bf16.mxu0 0
  %210 = vmatpush2.bf16.msra.mxu0 0
  %211 = vmatprep.subr.bf16.mxu0 0
  %212 = vmatpush2.bf16.msra.mxu0 0
  %213 = vmatprep.subr.bf16.mxu0 0
  %214 = vmatpush2.bf16.msra.mxu0 0
  %215 = vmatprep.mubr.bf16.mxu0 0
  %216 = vmatmul.mubr.bf16.gmra.mxu0 %v118
  %v217 = vpop.f32.mrf.mxu0
  %v218 = vadd.f32 0.0, %v217
  %v219 = vpop.f32.mrf.mxu0
  %v220 = vpop.f32.mrf.mxu0
  %v221 = vpop.f32.mrf.mxu0
  %222 = vdwg.mxu0
  %v223 = vpack.c.bf16 %v218, %v218
  %v224 = vld [vmem:[%s3] sm:$0xf]
  %v225 = vld [vmem:[%s3 + $0x4] sm:$0xf]
  %v226 = vld [vmem:[%s3 + $0x8] sm:$0xf]
  %v227 = vld [vmem:[%s3 + $0xc] sm:$0xf]
  %v228 = vld [vmem:[%s3 + $0x10] sm:$0xf]
  %v229 = vld [vmem:[%s3 + $0x14] sm:$0xf]
  %v230 = vld [vmem:[%s3 + $0x18] sm:$0xf]
  %v231 = vld [vmem:[%s3 + $0x1c] sm:$0xf]
  %v232 = vld [vmem:[%s3 + $0x20] sm:$0xf]
  %v233 = vld [vmem:[%s3 + $0x24] sm:$0xf]
  %v234 = vld [vmem:[%s3 + $0x28] sm:$0xf]
  %v235 = vld [vmem:[%s3 + $0x2c] sm:$0xf]
  %v236 = vld [vmem:[%s3 + $0x30] sm:$0xf]
  %v237 = vld [vmem:[%s3 + $0x34] sm:$0xf]
  %v238 = vld [vmem:[%s3 + $0x38] sm:$0xf]
  %v239 = vld [vmem:[%s3 + $0x3c] sm:$0xf]
  %v240 = vld [vmem:[%s4] sm:$0x1]
  %v242 = vlaneseq
  %v243 = vshrl.u32 %v242, 7
  %v244 = vsub.s32 0, %v243
  %v245 = vrot.slane %v240, %v244
  %v263 = vunpack.c.l.b16 %v224
  %v264 = vunpack.c.l.b16 %v225
  %v265 = vunpack.c.l.b16 %v226
  %v266 = vunpack.c.l.b16 %v227
  %v267 = vunpack.c.l.b16 %v228
  %v268 = vunpack.c.l.b16 %v229
  %v269 = vunpack.c.l.b16 %v230
  %v270 = vunpack.c.l.b16 %v231
  %v271 = vunpack.c.l.b16 %v232
  %v272 = vunpack.c.l.b16 %v233
  %v273 = vunpack.c.l.b16 %v234
  %v274 = vunpack.c.l.b16 %v235
  %v275 = vunpack.c.l.b16 %v236
  %v276 = vunpack.c.l.b16 %v237
  %v277 = vunpack.c.l.b16 %v238
  %v278 = vunpack.c.l.b16 %v239
  %v279 = vpack.c.b16 %v264, %v263
  %v280 = vpack.c.b16 %v266, %v265
  %v281 = vpack.c.b16 %v268, %v267
  %v282 = vpack.c.b16 %v270, %v269
  %v283 = vpack.c.b16 %v272, %v271
  %v284 = vpack.c.b16 %v274, %v273
  %v285 = vpack.c.b16 %v276, %v275
  %v286 = vpack.c.b16 %v278, %v277
  %295 = vmatprep.subr.bf16.mxu0 0
  %296 = vmatpush1.bf16.msra.mxu0 %v286
  %297 = vmatprep.subr.bf16.mxu0 0
  %298 = vmatpush1.bf16.msra.mxu0 %v285
  %299 = vmatprep.subr.bf16.mxu0 0
  %300 = vmatpush1.bf16.msra.mxu0 %v284
  %301 = vmatprep.subr.bf16.mxu0 0
  %302 = vmatpush1.bf16.msra.mxu0 %v283
  %303 = vmatprep.subr.bf16.mxu0 0
  %304 = vmatpush1.bf16.msra.mxu0 %v282
  %305 = vmatprep.subr.bf16.mxu0 0
  %306 = vmatpush1.bf16.msra.mxu0 %v281
  %307 = vmatprep.subr.bf16.mxu0 0
  %308 = vmatpush1.bf16.msra.mxu0 %v280
  %309 = vmatprep.subr.bf16.mxu0 0
  %310 = vmatpush1.bf16.msra.mxu0 %v279
  %311 = vmatprep.subr.bf16.mxu0 0
  %312 = vmatpush2.bf16.msra.mxu0 0
  %313 = vmatprep.subr.bf16.mxu0 0
  %314 = vmatpush2.bf16.msra.mxu0 0
  %315 = vmatprep.subr.bf16.mxu0 0
  %316 = vmatpush2.bf16.msra.mxu0 0
  %317 = vmatprep.subr.bf16.mxu0 0
  %318 = vmatpush2.bf16.msra.mxu0 0
  %319 = vmatprep.subr.bf16.mxu0 0
  %320 = vmatpush2.bf16.msra.mxu0 0
  %321 = vmatprep.subr.bf16.mxu0 0
  %322 = vmatpush2.bf16.msra.mxu0 0
  %323 = vmatprep.subr.bf16.mxu0 0
  %324 = vmatpush2.bf16.msra.mxu0 0
  %325 = vmatprep.subr.bf16.mxu0 0
  %326 = vmatpush2.bf16.msra.mxu0 0
  %327 = vmatprep.mubr.bf16.mxu0 0
  %328 = vmatmul.mubr.bf16.gmra.mxu0 %v223
  %v329 = vpop.f32.mrf.mxu0
  %v330 = vadd.f32 %v245, %v329
  %v331 = vpop.f32.mrf.mxu0
  %v332 = vpop.f32.mrf.mxu0
  %v333 = vpop.f32.mrf.mxu0
  %334 = vdwg.mxu0
  %v335 = vmax.f32 %v330, 0.0
  %v336 = vpack.c.bf16 %v335, %v335
  %v337 = vld [vmem:[%s5] sm:$0xf]
  %v338 = vld [vmem:[%s5 + $0x4] sm:$0xf]
  %v339 = vld [vmem:[%s5 + $0x8] sm:$0xf]
  %v340 = vld [vmem:[%s5 + $0xc] sm:$0xf]
  %v341 = vld [vmem:[%s5 + $0x10] sm:$0xf]
  %v342 = vld [vmem:[%s5 + $0x14] sm:$0xf]
  %v343 = vld [vmem:[%s5 + $0x18] sm:$0xf]
  %v344 = vld [vmem:[%s5 + $0x1c] sm:$0xf]
  %v345 = vld [vmem:[%s5 + $0x20] sm:$0xf]
  %v346 = vld [vmem:[%s5 + $0x24] sm:$0xf]
  %v347 = vld [vmem:[%s5 + $0x28] sm:$0xf]
  %v348 = vld [vmem:[%s5 + $0x2c] sm:$0xf]
  %v349 = vld [vmem:[%s5 + $0x30] sm:$0xf]
  %v350 = vld [vmem:[%s5 + $0x34] sm:$0xf]
  %v351 = vld [vmem:[%s5 + $0x38] sm:$0xf]
  %v352 = vld [vmem:[%s5 + $0x3c] sm:$0xf]
  %v353 = vld [vmem:[%s6] sm:$0x1]
  %v355 = vlaneseq
  %v356 = vshrl.u32 %v355, 7
  %v357 = vsub.s32 0, %v356
  %v358 = vrot.slane %v353, %v357
  %v376 = vunpack.c.l.b16 %v337
  %v377 = vunpack.c.l.b16 %v338
  %v378 = vunpack.c.l.b16 %v339
  %v379 = vunpack.c.l.b16 %v340
  %v380 = vunpack.c.l.b16 %v341
  %v381 = vunpack.c.l.b16 %v342
  %v382 = vunpack.c.l.b16 %v343
  %v383 = vunpack.c.l.b16 %v344
  %v384 = vunpack.c.l.b16 %v345
  %v385 = vunpack.c.l.b16 %v346
  %v386 = vunpack.c.l.b16 %v347
  %v387 = vunpack.c.l.b16 %v348
  %v388 = vunpack.c.l.b16 %v349
  %v389 = vunpack.c.l.b16 %v350
  %v390 = vunpack.c.l.b16 %v351
  %v391 = vunpack.c.l.b16 %v352
  %v392 = vpack.c.b16 %v377, %v376
  %v393 = vpack.c.b16 %v379, %v378
  %v394 = vpack.c.b16 %v381, %v380
  %v395 = vpack.c.b16 %v383, %v382
  %v396 = vpack.c.b16 %v385, %v384
  %v397 = vpack.c.b16 %v387, %v386
  %v398 = vpack.c.b16 %v389, %v388
  %v399 = vpack.c.b16 %v391, %v390
  %408 = vmatprep.subr.bf16.mxu0 0
  %409 = vmatpush1.bf16.msra.mxu0 %v399
  %410 = vmatprep.subr.bf16.mxu0 0
  %411 = vmatpush1.bf16.msra.mxu0 %v398
  %412 = vmatprep.subr.bf16.mxu0 0
  %413 = vmatpush1.bf16.msra.mxu0 %v397
  %414 = vmatprep.subr.bf16.mxu0 0
  %415 = vmatpush1.bf16.msra.mxu0 %v396
  %416 = vmatprep.subr.bf16.mxu0 0
  %417 = vmatpush1.bf16.msra.mxu0 %v395
  %418 = vmatprep.subr.bf16.mxu0 0
  %419 = vmatpush1.bf16.msra.mxu0 %v394
  %420 = vmatprep.subr.bf16.mxu0 0
  %421 = vmatpush1.bf16.msra.mxu0 %v393
  %422 = vmatprep.subr.bf16.mxu0 0
  %423 = vmatpush1.bf16.msra.mxu0 %v392
  %424 = vmatprep.subr.bf16.mxu0 0
  %425 = vmatpush2.bf16.msra.mxu0 0
  %426 = vmatprep.subr.bf16.mxu0 0
  %427 = vmatpush2.bf16.msra.mxu0 0
  %428 = vmatprep.subr.bf16.mxu0 0
  %429 = vmatpush2.bf16.msra.mxu0 0
  %430 = vmatprep.subr.bf16.mxu0 0
  %431 = vmatpush2.bf16.msra.mxu0 0
  %432 = vmatprep.subr.bf16.mxu0 0
  %433 = vmatpush2.bf16.msra.mxu0 0
  %434 = vmatprep.subr.bf16.mxu0 0
  %435 = vmatpush2.bf16.msra.mxu0 0
  %436 = vmatprep.subr.bf16.mxu0 0
  %437 = vmatpush2.bf16.msra.mxu0 0
  %438 = vmatprep.subr.bf16.mxu0 0
  %439 = vmatpush2.bf16.msra.mxu0 0
  %440 = vmatprep.mubr.bf16.mxu0 0
  %441 = vmatmul.mubr.bf16.gmra.mxu0 %v336
  %v442 = vpop.f32.mrf.mxu0
  %v443 = vadd.f32 %v358, %v442
  %v444 = vpop.f32.mrf.mxu0
  %v445 = vpop.f32.mrf.mxu0
  %v446 = vpop.f32.mrf.mxu0
  %447 = vdwg.mxu0
  %v448 = vmax.f32 %v443, 0.0
  %v449 = vpack.c.bf16 %v448, %v448
  %v450 = vld [vmem:[%s7] sm:$0xf]
  %v451 = vld [vmem:[%s7 + $0x4] sm:$0xf]
  %v452 = vld [vmem:[%s7 + $0x8] sm:$0xf]
  %v453 = vld [vmem:[%s7 + $0xc] sm:$0xf]
  %v454 = vld [vmem:[%s7 + $0x10] sm:$0xf]
  %v455 = vld [vmem:[%s7 + $0x14] sm:$0xf]
  %v456 = vld [vmem:[%s7 + $0x18] sm:$0xf]
  %v457 = vld [vmem:[%s7 + $0x1c] sm:$0xf]
  %v458 = vld [vmem:[%s7 + $0x20] sm:$0xf]
  %v459 = vld [vmem:[%s7 + $0x24] sm:$0xf]
  %v460 = vld [vmem:[%s7 + $0x28] sm:$0xf]
  %v461 = vld [vmem:[%s7 + $0x2c] sm:$0xf]
  %v462 = vld [vmem:[%s7 + $0x30] sm:$0xf]
  %v463 = vld [vmem:[%s7 + $0x34] sm:$0xf]
  %v464 = vld [vmem:[%s7 + $0x38] sm:$0xf]
  %v465 = vld [vmem:[%s7 + $0x3c] sm:$0xf]
  %v466 = vld [vmem:[%s8] sm:$0x1]
  %v468 = vlaneseq
  %v469 = vshrl.u32 %v468, 7
  %v470 = vsub.s32 0, %v469
  %v471 = vrot.slane %v466, %v470
  %v489 = vunpack.c.l.b16 %v450
  %v490 = vunpack.c.l.b16 %v451
  %v491 = vunpack.c.l.b16 %v452
  %v492 = vunpack.c.l.b16 %v453
  %v493 = vunpack.c.l.b16 %v454
  %v494 = vunpack.c.l.b16 %v455
  %v495 = vunpack.c.l.b16 %v456
  %v496 = vunpack.c.l.b16 %v457
  %v497 = vunpack.c.l.b16 %v458
  %v498 = vunpack.c.l.b16 %v459
  %v499 = vunpack.c.l.b16 %v460
  %v500 = vunpack.c.l.b16 %v461
  %v501 = vunpack.c.l.b16 %v462
  %v502 = vunpack.c.l.b16 %v463
  %v503 = vunpack.c.l.b16 %v464
  %v504 = vunpack.c.l.b16 %v465
  %v505 = vpack.c.b16 %v490, %v489
  %v506 = vpack.c.b16 %v492, %v491
  %v507 = vpack.c.b16 %v494, %v493
  %v508 = vpack.c.b16 %v496, %v495
  %v509 = vpack.c.b16 %v498, %v497
  %v510 = vpack.c.b16 %v500, %v499
  %v511 = vpack.c.b16 %v502, %v501
  %v512 = vpack.c.b16 %v504, %v503
  %521 = vmatprep.subr.bf16.mxu0 0
  %522 = vmatpush1.bf16.msra.mxu0 %v512
  %523 = vmatprep.subr.bf16.mxu0 0
  %524 = vmatpush1.bf16.msra.mxu0 %v511
  %525 = vmatprep.subr.bf16.mxu0 0
  %526 = vmatpush1.bf16.msra.mxu0 %v510
  %527 = vmatprep.subr.bf16.mxu0 0
  %528 = vmatpush1.bf16.msra.mxu0 %v509
  %529 = vmatprep.subr.bf16.mxu0 0
  %530 = vmatpush1.bf16.msra.mxu0 %v508
  %531 = vmatprep.subr.bf16.mxu0 0
  %532 = vmatpush1.bf16.msra.mxu0 %v507
  %533 = vmatprep.subr.bf16.mxu0 0
  %534 = vmatpush1.bf16.msra.mxu0 %v506
  %535 = vmatprep.subr.bf16.mxu0 0
  %536 = vmatpush1.bf16.msra.mxu0 %v505
  %537 = vmatprep.subr.bf16.mxu0 0
  %538 = vmatpush2.bf16.msra.mxu0 0
  %539 = vmatprep.subr.bf16.mxu0 0
  %540 = vmatpush2.bf16.msra.mxu0 0
  %541 = vmatprep.subr.bf16.mxu0 0
  %542 = vmatpush2.bf16.msra.mxu0 0
  %543 = vmatprep.subr.bf16.mxu0 0
  %544 = vmatpush2.bf16.msra.mxu0 0
  %545 = vmatprep.subr.bf16.mxu0 0
  %546 = vmatpush2.bf16.msra.mxu0 0
  %547 = vmatprep.subr.bf16.mxu0 0
  %548 = vmatpush2.bf16.msra.mxu0 0
  %549 = vmatprep.subr.bf16.mxu0 0
  %550 = vmatpush2.bf16.msra.mxu0 0
  %551 = vmatprep.subr.bf16.mxu0 0
  %552 = vmatpush2.bf16.msra.mxu0 0
  %553 = vmatprep.mubr.bf16.mxu0 0
  %554 = vmatmul.mubr.bf16.gmra.mxu0 %v449
  %v555 = vpop.f32.mrf.mxu0
  %v556 = vadd.f32 %v471, %v555
  %v557 = vpop.f32.mrf.mxu0
  %v558 = vpop.f32.mrf.mxu0
  %v559 = vpop.f32.mrf.mxu0
  %560 = vdwg.mxu0
  %561 = vst [vmem:[%s9] sm:$0xff] %v556
  // Predicated region
  $region38: #{_embnet_forward_impl.1} parent=0 // pred_check
    _
  $region39: #{_embnet_forward_impl.1} parent=0 // pred_check_branch
    %563 = sbr.rel (0) target = $region41
  $region40: #{_embnet_forward_impl.1} parent=0 // pred_region
    _
  $region41: #{_embnet_forward_impl.1} parent=0 // pred_fallthru
    _
  // Predicated region
  $region42: #{_embnet_forward_impl.1} parent=0 // pred_check
    _
  $region43: #{_embnet_forward_impl.1} parent=0 // pred_check_branch
    %565 = sbr.rel (0) target = $region45
  $region44: #{_embnet_forward_impl.1} parent=0 // pred_region
    _
  $region45: #{_embnet_forward_impl.1} parent=0 // pred_fallthru
    _

// kernel: _embnet_forward_impl.1
$region0: #{_embnet_forward_impl.1}
  #allocation0 [shape = 'u32[]', space=smem, size = 0x4, offset = 0x4, fixed_abs, tag = 'smem constant byte address 0x4 - core index']
  #allocation1 [shape = 'u32[144,128]{1,0:T(1,128)}', space=vmem, size = 0x12000, scoped, tag = 'internal scratch']
  %s0 = inlined_call_operand.vmem [shape: s32[8,8], index: 0, kind: input, shape index: {}]
  %s1 = inlined_call_operand.vmem [shape: f32[8,8], index: 1, kind: input, shape index: {}]
  %s2 = inlined_call_operand.vmem [shape: bf16[128,128], index: 2, kind: input, shape index: {}]
  %s3 = inlined_call_operand.vmem [shape: bf16[128,128], index: 3, kind: input, shape index: {}]
  %s4 = inlined_call_operand.vmem [shape: f32[1,128], index: 4, kind: input, shape index: {}]
  %s5 = inlined_call_operand.vmem [shape: bf16[128,128], index: 5, kind: input, shape index: {}]
  %s6 = inlined_call_operand.vmem [shape: f32[1,128], index: 6, kind: input, shape index: {}]
  %s7 = inlined_call_operand.vmem [shape: bf16[128,128], index: 7, kind: input, shape index: {}]
  %s8 = inlined_call_operand.vmem [shape: f32[1,128], index: 8, kind: input, shape index: {}]
  %s9 = inlined_call_operand.vmem [shape: f32[8,128], index: 9, kind: output, shape index: {}]
  %s10 = sld [smem:[#allocation0]]
  $region46: #{_embnet_forward_impl.1} parent=0
    _
  %s12 = ssub.s32 1, %s10
  %s13 = scalar_select 0, %s12, %s10
  // Predicated region
  $region2: #{_embnet_forward_impl.1} parent=0 // pred_check
    _
  $region3: #{_embnet_forward_impl.1} parent=0 // pred_check_branch
    %15 = sbr.rel (0) target = $region5
  $region4: #{_embnet_forward_impl.1} parent=0 // pred_region
    _
  $region5: #{_embnet_forward_impl.1} parent=0 // pred_fallthru
    _
  // Predicated region
  $region6: #{_embnet_forward_impl.1} parent=0 // pred_check
    _
  $region7: #{_embnet_forward_impl.1} parent=0 // pred_check_branch
    %17 = sbr.rel (0) target = $region9
  $region8: #{_embnet_forward_impl.1} parent=0 // pred_region
    _
  $region9: #{_embnet_forward_impl.1} parent=0 // pred_fallthru
    _
  // Predicated region
  $region10: #{_embnet_forward_impl.1} parent=0 // pred_check
    _
  $region11: #{_embnet_forward_impl.1} parent=0 // pred_check_branch
    %19 = sbr.rel (0) target = $region13
  $region12: #{_embnet_forward_impl.1} parent=0 // pred_region
    _
  $region13: #{_embnet_forward_impl.1} parent=0 // pred_fallthru
    _
  // Predicated region
  $region14: #{_embnet_forward_impl.1} parent=0 // pred_check
    _
  $region15: #{_embnet_forward_impl.1} parent=0 // pred_check_branch
    %21 = sbr.rel (0) target = $region17
  $region16: #{_embnet_forward_impl.1} parent=0 // pred_region
    _
  $region17: #{_embnet_forward_impl.1} parent=0 // pred_fallthru
    _
  // Predicated region
  $region18: #{_embnet_forward_impl.1} parent=0 // pred_check
    _
  $region19: #{_embnet_forward_impl.1} parent=0 // pred_check_branch
    %23 = sbr.rel (0) target = $region21
  $region20: #{_embnet_forward_impl.1} parent=0 // pred_region
    _
  $region21: #{_embnet_forward_impl.1} parent=0 // pred_fallthru
    _
  // Predicated region
  $region22: #{_embnet_forward_impl.1} parent=0 // pred_check
    _
  $region23: #{_embnet_forward_impl.1} parent=0 // pred_check_branch
    %25 = sbr.rel (0) target = $region25
  $region24: #{_embnet_forward_impl.1} parent=0 // pred_region
    _
  $region25: #{_embnet_forward_impl.1} parent=0 // pred_fallthru
    _
  // Predicated region
  $region26: #{_embnet_forward_impl.1} parent=0 // pred_check
    _
  $region27: #{_embnet_forward_impl.1} parent=0 // pred_check_branch
    %27 = sbr.rel (0) target = $region29
  $region28: #{_embnet_forward_impl.1} parent=0 // pred_region
    _
  $region29: #{_embnet_forward_impl.1} parent=0 // pred_fallthru
    _
  // Predicated region
  $region30: #{_embnet_forward_impl.1} parent=0 // pred_check
    _
  $region31: #{_embnet_forward_impl.1} parent=0 // pred_check_branch
    %29 = sbr.rel (0) target = $region33
  $region32: #{_embnet_forward_impl.1} parent=0 // pred_region
    _
  $region33: #{_embnet_forward_impl.1} parent=0 // pred_fallthru
    _
  // Predicated region
  $region34: #{_embnet_forward_impl.1} parent=0 // pred_check
    _
  $region35: #{_embnet_forward_impl.1} parent=0 // pred_check_branch
    %31 = sbr.rel (0) target = $region37
  $region36: #{_embnet_forward_impl.1} parent=0 // pred_region
    _
  $region37: #{_embnet_forward_impl.1} parent=0 // pred_fallthru
    _
  %v33 = vld [vmem:[%s0] sm:$0xff]
  %v34 = vld [vmem:[%s1] sm:$0xff]
  %v35 = vlaneseq
  %v36 = vand.u32 %v35, 127
  %37 = vset.pattern.permute.xlu0 0
  %38 = vperm.xlu0 %37, %v33
  %v39 = vpop.permute.xlu0 %38
  %vm40 = vcmp.eq.s32.totalorder %v39, %v36
  %42 = vset.pattern.permute.xlu0 0
  %43 = vperm.xlu0 %42, %v34
  %v44 = vpop.permute.xlu0 %43
  %v46 = vsel %vm40, %v44, 0.0
  %v47 = vadd.f32 %v46, 0.0
  %48 = vset.pattern.permute.xlu0 1
  %49 = vperm.xlu0 %48, %v33
  %v50 = vpop.permute.xlu0 %49
  %vm51 = vcmp.eq.s32.totalorder %v50, %v36
  %52 = vset.pattern.permute.xlu0 1
  %53 = vperm.xlu0 %52, %v34
  %v54 = vpop.permute.xlu0 %53
  %v56 = vsel %vm51, %v54, 0.0
  %v57 = vadd.f32 %v47, %v56
  %58 = vset.pattern.permute.xlu0 2
  %59 = vperm.xlu0 %58, %v33
  %v60 = vpop.permute.xlu0 %59
  %vm61 = vcmp.eq.s32.totalorder %v60, %v36
  %62 = vset.pattern.permute.xlu0 2
  %63 = vperm.xlu0 %62, %v34
  %v64 = vpop.permute.xlu0 %63
  %v66 = vsel %vm61, %v64, 0.0
  %v67 = vadd.f32 %v57, %v66
  %68 = vset.pattern.permute.xlu0 3
  %69 = vperm.xlu0 %68, %v33
  %v70 = vpop.permute.xlu0 %69
  %vm71 = vcmp.eq.s32.totalorder %v70, %v36
  %72 = vset.pattern.permute.xlu0 3
  %73 = vperm.xlu0 %72, %v34
  %v74 = vpop.permute.xlu0 %73
  %v76 = vsel %vm71, %v74, 0.0
  %v77 = vadd.f32 %v67, %v76
  %78 = vset.pattern.permute.xlu0 4
  %79 = vperm.xlu0 %78, %v33
  %v80 = vpop.permute.xlu0 %79
  %vm81 = vcmp.eq.s32.totalorder %v80, %v36
  %82 = vset.pattern.permute.xlu0 4
  %83 = vperm.xlu0 %82, %v34
  %v84 = vpop.permute.xlu0 %83
  %v86 = vsel %vm81, %v84, 0.0
  %v87 = vadd.f32 %v77, %v86
  %88 = vset.pattern.permute.xlu0 5
  %89 = vperm.xlu0 %88, %v33
  %v90 = vpop.permute.xlu0 %89
  %vm91 = vcmp.eq.s32.totalorder %v90, %v36
  %92 = vset.pattern.permute.xlu0 5
  %93 = vperm.xlu0 %92, %v34
  %v94 = vpop.permute.xlu0 %93
  %v96 = vsel %vm91, %v94, 0.0
  %v97 = vadd.f32 %v87, %v96
  %98 = vset.pattern.permute.xlu0 6
  %99 = vperm.xlu0 %98, %v33
  %v100 = vpop.permute.xlu0 %99
  %vm101 = vcmp.eq.s32.totalorder %v100, %v36
  %102 = vset.pattern.permute.xlu0 6
  %103 = vperm.xlu0 %102, %v34
  %v104 = vpop.permute.xlu0 %103
  %v106 = vsel %vm101, %v104, 0.0
  %v107 = vadd.f32 %v97, %v106
  %108 = vset.pattern.permute.xlu0 7
  %109 = vperm.xlu0 %108, %v33
  %v110 = vpop.permute.xlu0 %109
  %vm111 = vcmp.eq.s32.totalorder %v110, %v36
  %112 = vset.pattern.permute.xlu0 7
  %113 = vperm.xlu0 %112, %v34
  %v114 = vpop.permute.xlu0 %113
  %v116 = vsel %vm111, %v114, 0.0
  %v117 = vadd.f32 %v107, %v116
  %v118 = vpack.c.bf16 %v117, %v117
  %v119 = vld [vmem:[%s2] sm:$0xf]
  %v120 = vld [vmem:[%s2 + $0x4] sm:$0xf]
  %v121 = vld [vmem:[%s2 + $0x8] sm:$0xf]
  %v122 = vld [vmem:[%s2 + $0xc] sm:$0xf]
  %v123 = vld [vmem:[%s2 + $0x10] sm:$0xf]
  %v124 = vld [vmem:[%s2 + $0x14] sm:$0xf]
  %v125 = vld [vmem:[%s2 + $0x18] sm:$0xf]
  %v126 = vld [vmem:[%s2 + $0x1c] sm:$0xf]
  %v127 = vld [vmem:[%s2 + $0x20] sm:$0xf]
  %v128 = vld [vmem:[%s2 + $0x24] sm:$0xf]
  %v129 = vld [vmem:[%s2 + $0x28] sm:$0xf]
  %v130 = vld [vmem:[%s2 + $0x2c] sm:$0xf]
  %v131 = vld [vmem:[%s2 + $0x30] sm:$0xf]
  %v132 = vld [vmem:[%s2 + $0x34] sm:$0xf]
  %v133 = vld [vmem:[%s2 + $0x38] sm:$0xf]
  %v134 = vld [vmem:[%s2 + $0x3c] sm:$0xf]
  %v151 = vunpack.c.l.b16 %v119
  %v152 = vunpack.c.l.b16 %v120
  %v153 = vunpack.c.l.b16 %v121
  %v154 = vunpack.c.l.b16 %v122
  %v155 = vunpack.c.l.b16 %v123
  %v156 = vunpack.c.l.b16 %v124
  %v157 = vunpack.c.l.b16 %v125
  %v158 = vunpack.c.l.b16 %v126
  %v159 = vunpack.c.l.b16 %v127
  %v160 = vunpack.c.l.b16 %v128
  %v161 = vunpack.c.l.b16 %v129
  %v162 = vunpack.c.l.b16 %v130
  %v163 = vunpack.c.l.b16 %v131
  %v164 = vunpack.c.l.b16 %v132
  %v165 = vunpack.c.l.b16 %v133
  %v166 = vunpack.c.l.b16 %v134
  %v167 = vpack.c.b16 %v152, %v151
  %v168 = vpack.c.b16 %v154, %v153
  %v169 = vpack.c.b16 %v156, %v155
  %v170 = vpack.c.b16 %v158, %v157
  %v171 = vpack.c.b16 %v160, %v159
  %v172 = vpack.c.b16 %v162, %v161
  %v173 = vpack.c.b16 %v164, %v163
  %v174 = vpack.c.b16 %v166, %v165
  %183 = vmatprep.subr.bf16.mxu0 0
  %184 = vmatpush1.bf16.msra.mxu0 %v174
  %185 = vmatprep.subr.bf16.mxu0 0
  %186 = vmatpush1.bf16.msra.mxu0 %v173
  %187 = vmatprep.subr.bf16.mxu0 0
  %188 = vmatpush1.bf16.msra.mxu0 %v172
  %189 = vmatprep.subr.bf16.mxu0 0
  %190 = vmatpush1.bf16.msra.mxu0 %v171
  %191 = vmatprep.subr.bf16.mxu0 0
  %192 = vmatpush1.bf16.msra.mxu0 %v170
  %193 = vmatprep.subr.bf16.mxu0 0
  %194 = vmatpush1.bf16.msra.mxu0 %v169
  %195 = vmatprep.subr.bf16.mxu0 0
  %196 = vmatpush1.bf16.msra.mxu0 %v168
  %197 = vmatprep.subr.bf16.mxu0 0
  %198 = vmatpush1.bf16.msra.mxu0 %v167
  %199 = vmatprep.subr.bf16.mxu0 0
  %200 = vmatpush2.bf16.msra.mxu0 0
  %201 = vmatprep.subr.bf16.mxu0 0
  %202 = vmatpush2.bf16.msra.mxu0 0
  %203 = vmatprep.subr.bf16.mxu0 0
  %204 = vmatpush2.bf16.msra.mxu0 0
  %205 = vmatprep.subr.bf16.mxu0 0
  %206 = vmatpush2.bf16.msra.mxu0 0
  %207 = vmatprep.subr.bf16.mxu0 0
  %208 = vmatpush2.bf16.msra.mxu0 0
  %209 = vmatprep.subr.bf16.mxu0 0
  %210 = vmatpush2.bf16.msra.mxu0 0
  %211 = vmatprep.subr.bf16.mxu0 0
  %212 = vmatpush2.bf16.msra.mxu0 0
  %213 = vmatprep.subr.bf16.mxu0 0
  %214 = vmatpush2.bf16.msra.mxu0 0
  %215 = vmatprep.mubr.bf16.mxu0 0
  %216 = vmatmul.mubr.bf16.gmra.mxu0 %v118
  %v217 = vpop.f32.mrf.mxu0
  %v218 = vadd.f32 0.0, %v217
  %v219 = vpop.f32.mrf.mxu0
  %v220 = vpop.f32.mrf.mxu0
  %v221 = vpop.f32.mrf.mxu0
  %222 = vdwg.mxu0
  %v223 = vpack.c.bf16 %v218, %v218
  %v224 = vld [vmem:[%s3] sm:$0xf]
  %v225 = vld [vmem:[%s3 + $0x4] sm:$0xf]
  %v226 = vld [vmem:[%s3 + $0x8] sm:$0xf]
  %v227 = vld [vmem:[%s3 + $0xc] sm:$0xf]
  %v228 = vld [vmem:[%s3 + $0x10] sm:$0xf]
  %v229 = vld [vmem:[%s3 + $0x14] sm:$0xf]
  %v230 = vld [vmem:[%s3 + $0x18] sm:$0xf]
  %v231 = vld [vmem:[%s3 + $0x1c] sm:$0xf]
  %v232 = vld [vmem:[%s3 + $0x20] sm:$0xf]
  %v233 = vld [vmem:[%s3 + $0x24] sm:$0xf]
  %v234 = vld [vmem:[%s3 + $0x28] sm:$0xf]
  %v235 = vld [vmem:[%s3 + $0x2c] sm:$0xf]
  %v236 = vld [vmem:[%s3 + $0x30] sm:$0xf]
  %v237 = vld [vmem:[%s3 + $0x34] sm:$0xf]
  %v238 = vld [vmem:[%s3 + $0x38] sm:$0xf]
  %v239 = vld [vmem:[%s3 + $0x3c] sm:$0xf]
  %v240 = vld [vmem:[%s4] sm:$0x1]
  %v242 = vlaneseq
  %v243 = vshrl.u32 %v242, 7
  %v244 = vsub.s32 0, %v243
  %v245 = vrot.slane %v240, %v244
  %v263 = vunpack.c.l.b16 %v224
  %v264 = vunpack.c.l.b16 %v225
  %v265 = vunpack.c.l.b16 %v226
  %v266 = vunpack.c.l.b16 %v227
  %v267 = vunpack.c.l.b16 %v228
  %v268 = vunpack.c.l.b16 %v229
  %v269 = vunpack.c.l.b16 %v230
  %v270 = vunpack.c.l.b16 %v231
  %v271 = vunpack.c.l.b16 %v232
  %v272 = vunpack.c.l.b16 %v233
  %v273 = vunpack.c.l.b16 %v234
  %v274 = vunpack.c.l.b16 %v235
  %v275 = vunpack.c.l.b16 %v236
  %v276 = vunpack.c.l.b16 %v237
  %v277 = vunpack.c.l.b16 %v238
  %v278 = vunpack.c.l.b16 %v239
  %v279 = vpack.c.b16 %v264, %v263
  %v280 = vpack.c.b16 %v266, %v265
  %v281 = vpack.c.b16 %v268, %v267
  %v282 = vpack.c.b16 %v270, %v269
  %v283 = vpack.c.b16 %v272, %v271
  %v284 = vpack.c.b16 %v274, %v273
  %v285 = vpack.c.b16 %v276, %v275
  %v286 = vpack.c.b16 %v278, %v277
  %295 = vmatprep.subr.bf16.mxu0 0
  %296 = vmatpush1.bf16.msra.mxu0 %v286
  %297 = vmatprep.subr.bf16.mxu0 0
  %298 = vmatpush1.bf16.msra.mxu0 %v285
  %299 = vmatprep.subr.bf16.mxu0 0
  %300 = vmatpush1.bf16.msra.mxu0 %v284
  %301 = vmatprep.subr.bf16.mxu0 0
  %302 = vmatpush1.bf16.msra.mxu0 %v283
  %303 = vmatprep.subr.bf16.mxu0 0
  %304 = vmatpush1.bf16.msra.mxu0 %v282
  %305 = vmatprep.subr.bf16.mxu0 0
  %306 = vmatpush1.bf16.msra.mxu0 %v281
  %307 = vmatprep.subr.bf16.mxu0 0
  %308 = vmatpush1.bf16.msra.mxu0 %v280
  %309 = vmatprep.subr.bf16.mxu0 0
  %310 = vmatpush1.bf16.msra.mxu0 %v279
  %311 = vmatprep.subr.bf16.mxu0 0
  %312 = vmatpush2.bf16.msra.mxu0 0
  %313 = vmatprep.subr.bf16.mxu0 0
  %314 = vmatpush2.bf16.msra.mxu0 0
  %315 = vmatprep.subr.bf16.mxu0 0
  %316 = vmatpush2.bf16.msra.mxu0 0
  %317 = vmatprep.subr.bf16.mxu0 0
  %318 = vmatpush2.bf16.msra.mxu0 0
  %319 = vmatprep.subr.bf16.mxu0 0
  %320 = vmatpush2.bf16.msra.mxu0 0
  %321 = vmatprep.subr.bf16.mxu0 0
  %322 = vmatpush2.bf16.msra.mxu0 0
  %323 = vmatprep.subr.bf16.mxu0 0
  %324 = vmatpush2.bf16.msra.mxu0 0
  %325 = vmatprep.subr.bf16.mxu0 0
  %326 = vmatpush2.bf16.msra.mxu0 0
  %327 = vmatprep.mubr.bf16.mxu0 0
  %328 = vmatmul.mubr.bf16.gmra.mxu0 %v223
  %v329 = vpop.f32.mrf.mxu0
  %v330 = vadd.f32 %v245, %v329
  %v331 = vpop.f32.mrf.mxu0
  %v332 = vpop.f32.mrf.mxu0
  %v333 = vpop.f32.mrf.mxu0
  %334 = vdwg.mxu0
  %v335 = vmax.f32 %v330, 0.0
  %v336 = vpack.c.bf16 %v335, %v335
  %v337 = vld [vmem:[%s5] sm:$0xf]
  %v338 = vld [vmem:[%s5 + $0x4] sm:$0xf]
  %v339 = vld [vmem:[%s5 + $0x8] sm:$0xf]
  %v340 = vld [vmem:[%s5 + $0xc] sm:$0xf]
  %v341 = vld [vmem:[%s5 + $0x10] sm:$0xf]
  %v342 = vld [vmem:[%s5 + $0x14] sm:$0xf]
  %v343 = vld [vmem:[%s5 + $0x18] sm:$0xf]
  %v344 = vld [vmem:[%s5 + $0x1c] sm:$0xf]
  %v345 = vld [vmem:[%s5 + $0x20] sm:$0xf]
  %v346 = vld [vmem:[%s5 + $0x24] sm:$0xf]
  %v347 = vld [vmem:[%s5 + $0x28] sm:$0xf]
  %v348 = vld [vmem:[%s5 + $0x2c] sm:$0xf]
  %v349 = vld [vmem:[%s5 + $0x30] sm:$0xf]
  %v350 = vld [vmem:[%s5 + $0x34] sm:$0xf]
  %v351 = vld [vmem:[%s5 + $0x38] sm:$0xf]
  %v352 = vld [vmem:[%s5 + $0x3c] sm:$0xf]
  %v353 = vld [vmem:[%s6] sm:$0x1]
  %v355 = vlaneseq
  %v356 = vshrl.u32 %v355, 7
  %v357 = vsub.s32 0, %v356
  %v358 = vrot.slane %v353, %v357
  %v376 = vunpack.c.l.b16 %v337
  %v377 = vunpack.c.l.b16 %v338
  %v378 = vunpack.c.l.b16 %v339
  %v379 = vunpack.c.l.b16 %v340
  %v380 = vunpack.c.l.b16 %v341
  %v381 = vunpack.c.l.b16 %v342
  %v382 = vunpack.c.l.b16 %v343
  %v383 = vunpack.c.l.b16 %v344
  %v384 = vunpack.c.l.b16 %v345
  %v385 = vunpack.c.l.b16 %v346
  %v386 = vunpack.c.l.b16 %v347
  %v387 = vunpack.c.l.b16 %v348
  %v388 = vunpack.c.l.b16 %v349
  %v389 = vunpack.c.l.b16 %v350
  %v390 = vunpack.c.l.b16 %v351
  %v391 = vunpack.c.l.b16 %v352
  %v392 = vpack.c.b16 %v377, %v376
  %v393 = vpack.c.b16 %v379, %v378
  %v394 = vpack.c.b16 %v381, %v380
  %v395 = vpack.c.b16 %v383, %v382
  %v396 = vpack.c.b16 %v385, %v384
  %v397 = vpack.c.b16 %v387, %v386
  %v398 = vpack.c.b16 %v389, %v388
  %v399 = vpack.c.b16 %v391, %v390
  %408 = vmatprep.subr.bf16.mxu0 0
  %409 = vmatpush1.bf16.msra.mxu0 %v399
  %410 = vmatprep.subr.bf16.mxu0 0
  %411 = vmatpush1.bf16.msra.mxu0 %v398
  %412 = vmatprep.subr.bf16.mxu0 0
  %413 = vmatpush1.bf16.msra.mxu0 %v397
  %414 = vmatprep.subr.bf16.mxu0 0
  %415 = vmatpush1.bf16.msra.mxu0 %v396
  %416 = vmatprep.subr.bf16.mxu0 0
  %417 = vmatpush1.bf16.msra.mxu0 %v395
  %418 = vmatprep.subr.bf16.mxu0 0
  %419 = vmatpush1.bf16.msra.mxu0 %v394
  %420 = vmatprep.subr.bf16.mxu0 0
  %421 = vmatpush1.bf16.msra.mxu0 %v393
  %422 = vmatprep.subr.bf16.mxu0 0
  %423 = vmatpush1.bf16.msra.mxu0 %v392
  %424 = vmatprep.subr.bf16.mxu0 0
  %425 = vmatpush2.bf16.msra.mxu0 0
  %426 = vmatprep.subr.bf16.mxu0 0
  %427 = vmatpush2.bf16.msra.mxu0 0
  %428 = vmatprep.subr.bf16.mxu0 0
  %429 = vmatpush2.bf16.msra.mxu0 0
  %430 = vmatprep.subr.bf16.mxu0 0
  %431 = vmatpush2.bf16.msra.mxu0 0
  %432 = vmatprep.subr.bf16.mxu0 0
  %433 = vmatpush2.bf16.msra.mxu0 0
  %434 = vmatprep.subr.bf16.mxu0 0
  %435 = vmatpush2.bf16.msra.mxu0 0
  %436 = vmatprep.subr.bf16.mxu0 0
  %437 = vmatpush2.bf16.msra.mxu0 0
  %438 = vmatprep.subr.bf16.mxu0 0
  %439 = vmatpush2.bf16.msra.mxu0 0
  %440 = vmatprep.mubr.bf16.mxu0 0
  %441 = vmatmul.mubr.bf16.gmra.mxu0 %v336
  %v442 = vpop.f32.mrf.mxu0
  %v443 = vadd.f32 %v358, %v442
  %v444 = vpop.f32.mrf.mxu0
  %v445 = vpop.f32.mrf.mxu0
  %v446 = vpop.f32.mrf.mxu0
  %447 = vdwg.mxu0
  %v448 = vmax.f32 %v443, 0.0
  %v449 = vpack.c.bf16 %v448, %v448
  %v450 = vld [vmem:[%s7] sm:$0xf]
  %v451 = vld [vmem:[%s7 + $0x4] sm:$0xf]
  %v452 = vld [vmem:[%s7 + $0x8] sm:$0xf]
  %v453 = vld [vmem:[%s7 + $0xc] sm:$0xf]
  %v454 = vld [vmem:[%s7 + $0x10] sm:$0xf]
  %v455 = vld [vmem:[%s7 + $0x14] sm:$0xf]
  %v456 = vld [vmem:[%s7 + $0x18] sm:$0xf]
  %v457 = vld [vmem:[%s7 + $0x1c] sm:$0xf]
  %v458 = vld [vmem:[%s7 + $0x20] sm:$0xf]
  %v459 = vld [vmem:[%s7 + $0x24] sm:$0xf]
  %v460 = vld [vmem:[%s7 + $0x28] sm:$0xf]
  %v461 = vld [vmem:[%s7 + $0x2c] sm:$0xf]
  %v462 = vld [vmem:[%s7 + $0x30] sm:$0xf]
  %v463 = vld [vmem:[%s7 + $0x34] sm:$0xf]
  %v464 = vld [vmem:[%s7 + $0x38] sm:$0xf]
  %v465 = vld [vmem:[%s7 + $0x3c] sm:$0xf]
  %v466 = vld [vmem:[%s8] sm:$0x1]
  %v468 = vlaneseq
  %v469 = vshrl.u32 %v468, 7
  %v470 = vsub.s32 0, %v469
  %v471 = vrot.slane %v466, %v470
  %v489 = vunpack.c.l.b16 %v450
  %v490 = vunpack.c.l.b16 %v451
  %v491 = vunpack.c.l.b16 %v452
  %v492 = vunpack.c.l.b16 %v453
  %v493 = vunpack.c.l.b16 %v454
  %v494 = vunpack.c.l.b16 %v455
  %v495 = vunpack.c.l.b16 %v456
  %v496 = vunpack.c.l.b16 %v457
  %v497 = vunpack.c.l.b16 %v458
  %v498 = vunpack.c.l.b16 %v459
  %v499 = vunpack.c.l.b16 %v460
  %v500 = vunpack.c.l.b16 %v461
  %v501 = vunpack.c.l.b16 %v462
  %v502 = vunpack.c.l.b16 %v463
  %v503 = vunpack.c.l.b16 %v464
  %v504 = vunpack.c.l.b16 %v465
  %v505 = vpack.c.b16 %v490, %v489
  %v506 = vpack.c.b16 %v492, %v491
  %v507 = vpack.c.b16 %v494, %v493
  %v508 = vpack.c.b16 %v496, %v495
  %v509 = vpack.c.b16 %v498, %v497
  %v510 = vpack.c.b16 %v500, %v499
  %v511 = vpack.c.b16 %v502, %v501
  %v512 = vpack.c.b16 %v504, %v503
  %521 = vmatprep.subr.bf16.mxu0 0
  %522 = vmatpush1.bf16.msra.mxu0 %v512
  %523 = vmatprep.subr.bf16.mxu0 0
  %524 = vmatpush1.bf16.msra.mxu0 %v511
  %525 = vmatprep.subr.bf16.mxu0 0
  %526 = vmatpush1.bf16.msra.mxu0 %v510
  %527 = vmatprep.subr.bf16.mxu0 0
  %528 = vmatpush1.bf16.msra.mxu0 %v509
  %529 = vmatprep.subr.bf16.mxu0 0
  %530 = vmatpush1.bf16.msra.mxu0 %v508
  %531 = vmatprep.subr.bf16.mxu0 0
  %532 = vmatpush1.bf16.msra.mxu0 %v507
  %533 = vmatprep.subr.bf16.mxu0 0
  %534 = vmatpush1.bf16.msra.mxu0 %v506
  %535 = vmatprep.subr.bf16.mxu0 0
  %536 = vmatpush1.bf16.msra.mxu0 %v505
  %537 = vmatprep.subr.bf16.mxu0 0
  %538 = vmatpush2.bf16.msra.mxu0 0
  %539 = vmatprep.subr.bf16.mxu0 0
  %540 = vmatpush2.bf16.msra.mxu0 0
  %541 = vmatprep.subr.bf16.mxu0 0
  %542 = vmatpush2.bf16.msra.mxu0 0
  %543 = vmatprep.subr.bf16.mxu0 0
  %544 = vmatpush2.bf16.msra.mxu0 0
  %545 = vmatprep.subr.bf16.mxu0 0
  %546 = vmatpush2.bf16.msra.mxu0 0
  %547 = vmatprep.subr.bf16.mxu0 0
  %548 = vmatpush2.bf16.msra.mxu0 0
  %549 = vmatprep.subr.bf16.mxu0 0
  %550 = vmatpush2.bf16.msra.mxu0 0
  %551 = vmatprep.subr.bf16.mxu0 0
  %552 = vmatpush2.bf16.msra.mxu0 0
  %553 = vmatprep.mubr.bf16.mxu0 0
  %554 = vmatmul.mubr.bf16.gmra.mxu0 %v449
  %v555 = vpop.f32.mrf.mxu0
  %v556 = vadd.f32 %v471, %v555
  %v557 = vpop.f32.mrf.mxu0
  %v558 = vpop.f32.mrf.mxu0
  %v559 = vpop.f32.mrf.mxu0
  %560 = vdwg.mxu0
  %561 = vst [vmem:[%s9] sm:$0xff] %v556
  // Predicated region
  $region38: #{_embnet_forward_impl.1} parent=0 // pred_check
    _
  $region39: #{_embnet_forward_impl.1} parent=0 // pred_check_branch
    %563 = sbr.rel (0) target = $region41
  $region40: #{_embnet_forward_impl.1} parent=0 // pred_region
    _
  $region41: #{_embnet_forward_impl.1} parent=0 // pred_fallthru
    _
  // Predicated region
  $region42: #{_embnet_forward_impl.1} parent=0 // pred_check
    _
  $region43: #{_embnet_forward_impl.1} parent=0 // pred_check_branch
    %565 = sbr.rel (0) target = $region45
  $region44: #{_embnet_forward_impl.1} parent=0 // pred_region
    _
  $region45: #{_embnet_forward_impl.1} parent=0 // pred_fallthru
    _

</llo_original>
